<compile_context>
chip_gen: v6e
topology: v6e:2x2x1
jax: 0.10.0
libtpu: 0.0.40
codegen_flags: <defaults>
</compile_context>

<pallas_src>
import jax
import jax.numpy as jnp
from jax import lax
from jax.experimental import pallas as pl
from jax.experimental.pallas import tpu as pltpu


def _silu(v):
    # sigmoid = 1 / (1 + exp(-v)); exp and approx-reciprocal both run on the EUP
    return v * pl.reciprocal(1.0 + jnp.exp(-v), approx=True)


# ----------------------------------------------------------------------------
# Fused kernel: single grid step, in-kernel (unrolled) loop over layers.
# ----------------------------------------------------------------------------
def egnn_fused_kernel(h0_ref, x0_ref, gsrc_ref, gdst_ref,
                      we1_hi_ref, we1_hj_ref, we1_r_ref, be1_ref,
                      we2_ref, be2_ref,
                      wx1_ref, bx1_ref, wx2_ref, bx2_ref,
                      wh1_h_ref, wh1_m_ref, bh1_ref,
                      wh2_ref, bh2_ref,
                      state_ref):
    f32 = jnp.float32
    n_layers = we2_ref.shape[0]
    hdim = h0_ref.shape[1]

    h = h0_ref[...]                           # [N, H]  f32
    x = x0_ref[...]                           # [N, 3]  f32
    # bf16 one-hots (0/1 are exact) -> cast once; node/edge values stay f32 so
    # every gather/scatter is bit-exact.
    g_src = gsrc_ref[...].astype(f32)         # [E, N]  one-hot of edge_index[0] ("_j")
    g_dst = gdst_ref[...].astype(f32)         # [E, N]  one-hot of edge_index[1] ("_i")

    for l in range(n_layers):                 # static -> unrolled at trace time
        # phi_e layer 1, reassociated: project per-node, gather per-edge later.
        t_i = jnp.dot(h, we1_hi_ref[l], preferred_element_type=f32)   # [N, H]
        t_j = jnp.dot(h, we1_hj_ref[l], preferred_element_type=f32)   # [N, H]

        # Fused gathers: one MXU pass per one-hot matrix (result width H+3 <= 128).
        src_slab = jnp.concatenate([t_j, x], axis=1)                  # [N, H+3]
        dst_slab = jnp.concatenate([t_i, x], axis=1)                  # [N, H+3]
        gs = jnp.dot(g_src, src_slab, preferred_element_type=f32)     # [E, H+3]
        gd = jnp.dot(g_dst, dst_slab, preferred_element_type=f32)     # [E, H+3]

        x_diff = gs[:, hdim:] - gd[:, hdim:]                          # [E, 3]
        r_ij = jnp.sqrt(jnp.sum(x_diff * x_diff, axis=-1, keepdims=True))  # [E, 1]
        # NOTE: r_ij = sqrt(0) for self-loops is fine forward; guard with eps if a VJP is added.

        # phi_e
        z = _silu(gd[:, :hdim] + gs[:, :hdim]            # h_i-proj + h_j-proj
                  + r_ij * we1_r_ref[l] + be1_ref[l])
        m = _silu(jnp.dot(z, we2_ref[l], preferred_element_type=f32) + be2_ref[l])  # [E, H]

        # phi_x -> per-edge scalar weight
        u = _silu(jnp.dot(m, wx1_ref[l], preferred_element_type=f32) + bx1_ref[l])
        w_ij = jnp.dot(u, wx2_ref[l], preferred_element_type=f32) + bx2_ref[l]      # [E, 1]

        # Fused scatter-add at dst: single E-contraction producing [m_i | dx].
        edge_slab = jnp.concatenate([m, w_ij * x_diff], axis=1)       # [E, H+3]
        agg = lax.dot_general(g_dst, edge_slab, (((0,), (0,)), ((), ())),
                              preferred_element_type=f32)             # [N, H+3]
        m_i = agg[:, :hdim]                                           # [N, H]
        dx = agg[:, hdim:]                                            # [N, 3]

        x = x + dx

        # phi_h on cat([h, m_i]) (split weights), residual add.
        v = _silu(jnp.dot(h, wh1_h_ref[l], preferred_element_type=f32)
                  + jnp.dot(m_i, wh1_m_ref[l], preferred_element_type=f32)
                  + bh1_ref[l])
        h = h + jnp.dot(v, wh2_ref[l], preferred_element_type=f32) + bh2_ref[l]

    # single lane-packed writeback: [h | x]
    state_ref[...] = jnp.concatenate([h, x], axis=1)


# ----------------------------------------------------------------------------
# Parameter init (deterministic, synthetic; matches nn.Linear / nn.Embedding
# shapes with weights stored [in, out] and concatenated blocks pre-split)
# ----------------------------------------------------------------------------
def _linear(key, fan_in, fan_out):
    kw, kb = jax.random.split(key)
    bound = 1.0 / (fan_in ** 0.5)
    w = jax.random.uniform(kw, (fan_in, fan_out), jnp.float32, -bound, bound)
    b = jax.random.uniform(kb, (1, fan_out), jnp.float32, -bound, bound)
    return w, b


def init_params(key, hidden, n_layers, vocab=100):
    keys = jax.random.split(key, 1 + n_layers)
    emb = jax.random.normal(keys[0], (vocab, hidden), jnp.float32)
    emb = emb.at[0].set(0.0)                     # padding_idx=0

    layers = []
    for i in range(n_layers):
        ks = jax.random.split(keys[1 + i], 6)
        we1, be1 = _linear(ks[0], 2 * hidden + 1, hidden)     # phi_e[0]
        we2, be2 = _linear(ks[1], hidden, hidden)             # phi_e[2]
        wx1, bx1 = _linear(ks[2], hidden, hidden)             # phi_x[0]
        wx2, bx2 = _linear(ks[3], hidden, 1)                  # phi_x[2]
        wh1, bh1 = _linear(ks[4], 2 * hidden, hidden)         # phi_h[0]
        wh2, bh2 = _linear(ks[5], hidden, hidden)             # phi_h[2]
        layers.append(dict(
            we1_hi=we1[:hidden], we1_hj=we1[hidden:2 * hidden],
            we1_r=we1[2 * hidden:], be1=be1, we2=we2, be2=be2,
            wx1=wx1, bx1=bx1, wx2=wx2, bx2=bx2,
            wh1_h=wh1[:hidden], wh1_m=wh1[hidden:], bh1=bh1,
            wh2=wh2, bh2=bh2))
    stacked = {k: jnp.stack([lyr[k] for lyr in layers]) for k in layers[0]}
    return {"embedding": emb, **stacked}


_WEIGHT_NAMES = ("we1_hi", "we1_hj", "we1_r", "be1", "we2", "be2",
                 "wx1", "bx1", "wx2", "bx2",
                 "wh1_h", "wh1_m", "bh1", "wh2", "bh2")


# ----------------------------------------------------------------------------
# EGGNEncoder forward (single fused pallas_call)
# ----------------------------------------------------------------------------
def egnn_encoder_forward(params, atomic_numbers, pos, edge_index, edge_attr=None):
    # edge_attr is accepted (as in the PyTorch module) but unused by message().
    emb = params["embedding"]
    hidden = emb.shape[1]
    n = atomic_numbers.shape[0]

    # h = embedding(atomic_numbers.int()); x = pos.clone()
    h0 = jnp.take(emb, atomic_numbers.astype(jnp.int32), axis=0)      # [N, H]
    x0 = pos.astype(jnp.float32)                                      # [N, 3]

    # One-hot gather/scatter matrices (constant across layers), stored bf16:
    # 0/1 are exact, and bf16 halves the HBM/VMEM footprint of the biggest arrays.
    node_ids = jnp.arange(n, dtype=jnp.int32)[None, :]
    g_src = (edge_index[0].astype(jnp.int32)[:, None] == node_ids).astype(jnp.bfloat16)
    g_dst = (edge_index[1].astype(jnp.int32)[:, None] == node_ids).astype(jnp.bfloat16)

    weights = [params[k] for k in _WEIGHT_NAMES]

    def whole(arr):   # whole-array VMEM block
        return pl.BlockSpec(arr.shape, lambda i, nd=arr.ndim: (0,) * nd)

    state = pl.pallas_call(
        egnn_fused_kernel,
        grid=(1,),     # single step: all weights fit in VMEM, layers loop in-kernel
        in_specs=[whole(a) for a in (h0, x0, g_src, g_dst)]
                 + [whole(w) for w in weights],
        out_specs=pl.BlockSpec((n, hidden + 3), lambda i: (0, 0)),
        out_shape=jax.ShapeDtypeStruct((n, hidden + 3), jnp.float32),
        compiler_params=pltpu.CompilerParams(
            dimension_semantics=("arbitrary",)),
    )(h0, x0, g_src, g_dst, *weights)

    # batch.h = updated node features, batch.x = updated positions
    return {"h": state[:, :hidden], "x": state[:, hidden:]}


# ----------------------------------------------------------------------------
if __name__ == "__main__":
    HIDDEN = 32
    N_LAYERS = 2           # EGGNEncoder default
    N_NODES = 8
    N_EDGES = 16

    key = jax.random.PRNGKey(0)
    k_params, k_atoms, k_pos, k_edges, k_attr = jax.random.split(key, 5)

    params = init_params(k_params, HIDDEN, N_LAYERS)

    atomic_numbers = jax.random.randint(k_atoms, (N_NODES,), 0, 100, jnp.int32)
    pos = jax.random.normal(k_pos, (N_NODES, 3), jnp.float32)
    edge_index = jax.random.randint(k_edges, (2, N_EDGES), 0, N_NODES, jnp.int32)
    edge_attr = jax.random.normal(k_attr, (N_EDGES, 1), jnp.float32)

    out = egnn_encoder_forward(params, atomic_numbers, pos, edge_index, edge_attr)
    jax.block_until_ready(out)

    assert out["h"].shape == (N_NODES, HIDDEN)
    assert out["x"].shape == (N_NODES, 3)
    assert jnp.all(jnp.isfinite(out["h"])) and jnp.all(jnp.isfinite(out["x"]))
    print("KERNEL_OK")
</pallas_src>

<mosaic_0001>
module attributes {stable_mosaic.version = 11 : i64} {
  func.func @egnn_fused_kernel(%arg0: i32, %arg1: memref<8x32xf32, #tpu.memory_space<vmem>>, %arg2: memref<8x3xf32, #tpu.memory_space<vmem>>, %arg3: memref<16x8xbf16, #tpu.memory_space<vmem>>, %arg4: memref<16x8xbf16, #tpu.memory_space<vmem>>, %arg5: memref<2x32x32xf32, #tpu.memory_space<vmem>>, %arg6: memref<2x32x32xf32, #tpu.memory_space<vmem>>, %arg7: memref<2x1x32xf32, #tpu.memory_space<vmem>>, %arg8: memref<2x1x32xf32, #tpu.memory_space<vmem>>, %arg9: memref<2x32x32xf32, #tpu.memory_space<vmem>>, %arg10: memref<2x1x32xf32, #tpu.memory_space<vmem>>, %arg11: memref<2x32x32xf32, #tpu.memory_space<vmem>>, %arg12: memref<2x1x32xf32, #tpu.memory_space<vmem>>, %arg13: memref<2x32x1xf32, #tpu.memory_space<vmem>>, %arg14: memref<2x1x1xf32, #tpu.memory_space<vmem>>, %arg15: memref<2x32x32xf32, #tpu.memory_space<vmem>>, %arg16: memref<2x32x32xf32, #tpu.memory_space<vmem>>, %arg17: memref<2x1x32xf32, #tpu.memory_space<vmem>>, %arg18: memref<2x32x32xf32, #tpu.memory_space<vmem>>, %arg19: memref<2x1x32xf32, #tpu.memory_space<vmem>>, %arg20: memref<8x35xf32, #tpu.memory_space<vmem>>) attributes {dimension_semantics = [#tpu.dimension_semantics<arbitrary>], iteration_bounds = array<i64: 1>, scalar_prefetch = 0 : i64, scratch_operands = 0 : i64, tpu.core_type = #tpu.core_type<tc>, window_params = [{pipeline_mode = #tpu.pipeline_mode<synchronous>, transform_indices = @transform_0, window_bounds = array<i64: 8, 32>}, {pipeline_mode = #tpu.pipeline_mode<synchronous>, transform_indices = @transform_1, window_bounds = array<i64: 8, 3>}, {pipeline_mode = #tpu.pipeline_mode<synchronous>, transform_indices = @transform_2, window_bounds = array<i64: 16, 8>}, {pipeline_mode = #tpu.pipeline_mode<synchronous>, transform_indices = @transform_3, window_bounds = array<i64: 16, 8>}, {pipeline_mode = #tpu.pipeline_mode<synchronous>, transform_indices = @transform_4, window_bounds = array<i64: 2, 32, 32>}, {pipeline_mode = #tpu.pipeline_mode<synchronous>, transform_indices = @transform_5, window_bounds = array<i64: 2, 32, 32>}, {pipeline_mode = #tpu.pipeline_mode<synchronous>, transform_indices = @transform_6, window_bounds = array<i64: 2, 1, 32>}, {pipeline_mode = #tpu.pipeline_mode<synchronous>, transform_indices = @transform_7, window_bounds = array<i64: 2, 1, 32>}, {pipeline_mode = #tpu.pipeline_mode<synchronous>, transform_indices = @transform_8, window_bounds = array<i64: 2, 32, 32>}, {pipeline_mode = #tpu.pipeline_mode<synchronous>, transform_indices = @transform_9, window_bounds = array<i64: 2, 1, 32>}, {pipeline_mode = #tpu.pipeline_mode<synchronous>, transform_indices = @transform_10, window_bounds = array<i64: 2, 32, 32>}, {pipeline_mode = #tpu.pipeline_mode<synchronous>, transform_indices = @transform_11, window_bounds = array<i64: 2, 1, 32>}, {pipeline_mode = #tpu.pipeline_mode<synchronous>, transform_indices = @transform_12, window_bounds = array<i64: 2, 32, 1>}, {pipeline_mode = #tpu.pipeline_mode<synchronous>, transform_indices = @transform_13, window_bounds = array<i64: 2, 1, 1>}, {pipeline_mode = #tpu.pipeline_mode<synchronous>, transform_indices = @transform_14, window_bounds = array<i64: 2, 32, 32>}, {pipeline_mode = #tpu.pipeline_mode<synchronous>, transform_indices = @transform_15, window_bounds = array<i64: 2, 32, 32>}, {pipeline_mode = #tpu.pipeline_mode<synchronous>, transform_indices = @transform_16, window_bounds = array<i64: 2, 1, 32>}, {pipeline_mode = #tpu.pipeline_mode<synchronous>, transform_indices = @transform_17, window_bounds = array<i64: 2, 32, 32>}, {pipeline_mode = #tpu.pipeline_mode<synchronous>, transform_indices = @transform_18, window_bounds = array<i64: 2, 1, 32>}, {pipeline_mode = #tpu.pipeline_mode<synchronous>, transform_indices = @transform_19, window_bounds = array<i64: 8, 35>}]} {
    %c0 = arith.constant 0 : index
    %c0_0 = arith.constant 0 : index
    %0 = vector.load %arg1[%c0, %c0_0] : memref<8x32xf32, #tpu.memory_space<vmem>>, vector<8x32xf32>
    %c0_1 = arith.constant 0 : index
    %c0_2 = arith.constant 0 : index
    %1 = vector.load %arg2[%c0_1, %c0_2] : memref<8x3xf32, #tpu.memory_space<vmem>>, vector<8x3xf32>
    %c0_3 = arith.constant 0 : index
    %c0_4 = arith.constant 0 : index
    %2 = vector.load %arg3[%c0_3, %c0_4] : memref<16x8xbf16, #tpu.memory_space<vmem>>, vector<16x8xbf16>
    %3 = arith.extf %2 : vector<16x8xbf16> to vector<16x8xf32>
    %c0_5 = arith.constant 0 : index
    %c0_6 = arith.constant 0 : index
    %4 = vector.load %arg4[%c0_5, %c0_6] : memref<16x8xbf16, #tpu.memory_space<vmem>>, vector<16x8xbf16>
    %5 = arith.extf %4 : vector<16x8xbf16> to vector<16x8xf32>
    %c0_7 = arith.constant 0 : index
    %c0_8 = arith.constant 0 : index
    %c0_9 = arith.constant 0 : index
    %6 = vector.load %arg5[%c0_7, %c0_8, %c0_9] : memref<2x32x32xf32, #tpu.memory_space<vmem>>, vector<1x32x32xf32>
    %7 = vector.shape_cast %6 : vector<1x32x32xf32> to vector<32x32xf32>
    %cst = arith.constant dense<0.000000e+00> : vector<8x32xf32>
    %8 = tpu.matmul %0, %7, %cst {dimension_numbers = #tpu.dot_dimension_numbers<[1], [0], [0], [1], [0, 0, 1, 1], [], []>} : vector<8x32xf32>, vector<32x32xf32>, vector<8x32xf32> -> vector<8x32xf32>
    %c0_10 = arith.constant 0 : index
    %c0_11 = arith.constant 0 : index
    %c0_12 = arith.constant 0 : index
    %9 = vector.load %arg6[%c0_10, %c0_11, %c0_12] : memref<2x32x32xf32, #tpu.memory_space<vmem>>, vector<1x32x32xf32>
    %10 = vector.shape_cast %9 : vector<1x32x32xf32> to vector<32x32xf32>
    %cst_13 = arith.constant dense<0.000000e+00> : vector<8x32xf32>
    %11 = tpu.matmul %0, %10, %cst_13 {dimension_numbers = #tpu.dot_dimension_numbers<[1], [0], [0], [1], [0, 0, 1, 1], [], []>} : vector<8x32xf32>, vector<32x32xf32>, vector<8x32xf32> -> vector<8x32xf32>
    %12 = tpu.concatenate %11, %1 in 1 : vector<8x32xf32>, vector<8x3xf32> -> vector<8x35xf32>
    %13 = tpu.concatenate %8, %1 in 1 : vector<8x32xf32>, vector<8x3xf32> -> vector<8x35xf32>
    %cst_14 = arith.constant dense<0.000000e+00> : vector<16x35xf32>
    %14 = tpu.matmul %3, %12, %cst_14 {dimension_numbers = #tpu.dot_dimension_numbers<[1], [0], [0], [1], [0, 0, 1, 1], [], []>} : vector<16x8xf32>, vector<8x35xf32>, vector<16x35xf32> -> vector<16x35xf32>
    %cst_15 = arith.constant dense<0.000000e+00> : vector<16x35xf32>
    %15 = tpu.matmul %5, %13, %cst_15 {dimension_numbers = #tpu.dot_dimension_numbers<[1], [0], [0], [1], [0, 0, 1, 1], [], []>} : vector<16x8xf32>, vector<8x35xf32>, vector<16x35xf32> -> vector<16x35xf32>
    %16 = vector.extract_strided_slice %14 {offsets = [0, 32], sizes = [16, 3], strides = [1, 1]} : vector<16x35xf32> to vector<16x3xf32>
    %17 = vector.extract_strided_slice %15 {offsets = [0, 32], sizes = [16, 3], strides = [1, 1]} : vector<16x35xf32> to vector<16x3xf32>
    %18 = arith.subf %16, %17 : vector<16x3xf32>
    %19 = arith.mulf %18, %18 : vector<16x3xf32>
    %cst_16 = arith.constant dense<0.000000e+00> : vector<16xf32>
    %20 = vector.multi_reduction <add>, %19, %cst_16 [1] : vector<16x3xf32> to vector<16xf32>
    %21 = vector.shape_cast %20 : vector<16xf32> to vector<16x1xf32>
    %22 = math.sqrt %21 : vector<16x1xf32>
    %23 = vector.extract_strided_slice %15 {offsets = [0, 0], sizes = [16, 32], strides = [1, 1]} : vector<16x35xf32> to vector<16x32xf32>
    %24 = vector.extract_strided_slice %14 {offsets = [0, 0], sizes = [16, 32], strides = [1, 1]} : vector<16x35xf32> to vector<16x32xf32>
    %25 = arith.addf %23, %24 : vector<16x32xf32>
    %c0_17 = arith.constant 0 : index
    %c0_18 = arith.constant 0 : index
    %c0_19 = arith.constant 0 : index
    %26 = vector.load %arg7[%c0_17, %c0_18, %c0_19] : memref<2x1x32xf32, #tpu.memory_space<vmem>>, vector<1x1x32xf32>
    %27 = vector.shape_cast %26 : vector<1x1x32xf32> to vector<1x32xf32>
    %28 = vector.broadcast %22 : vector<16x1xf32> to vector<16x32xf32>
    %29 = vector.broadcast %27 : vector<1x32xf32> to vector<16x32xf32>
    %30 = arith.mulf %28, %29 : vector<16x32xf32>
    %31 = arith.addf %25, %30 : vector<16x32xf32>
    %c0_20 = arith.constant 0 : index
    %c0_21 = arith.constant 0 : index
    %c0_22 = arith.constant 0 : index
    %32 = vector.load %arg8[%c0_20, %c0_21, %c0_22] : memref<2x1x32xf32, #tpu.memory_space<vmem>>, vector<1x1x32xf32>
    %33 = vector.shape_cast %32 : vector<1x1x32xf32> to vector<1x32xf32>
    %34 = vector.broadcast %33 : vector<1x32xf32> to vector<16x32xf32>
    %35 = arith.addf %31, %34 : vector<16x32xf32>
    %cst_23 = arith.constant 0.000000e+00 : f32
    %36 = vector.broadcast %cst_23 : f32 to vector<16x32xf32>
    %37 = arith.subf %36, %35 : vector<16x32xf32>
    %38 = math.exp %37 : vector<16x32xf32>
    %cst_24 = arith.constant 1.000000e+00 : f32
    %39 = vector.broadcast %cst_24 : f32 to vector<16x32xf32>
    %40 = arith.addf %39, %38 : vector<16x32xf32>
    %41 = tpu.reciprocal %40 {approx = true} : vector<16x32xf32> -> vector<16x32xf32>
    %42 = arith.mulf %35, %41 : vector<16x32xf32>
    %c0_25 = arith.constant 0 : index
    %c0_26 = arith.constant 0 : index
    %c0_27 = arith.constant 0 : index
    %43 = vector.load %arg9[%c0_25, %c0_26, %c0_27] : memref<2x32x32xf32, #tpu.memory_space<vmem>>, vector<1x32x32xf32>
    %44 = vector.shape_cast %43 : vector<1x32x32xf32> to vector<32x32xf32>
    %cst_28 = arith.constant dense<0.000000e+00> : vector<16x32xf32>
    %45 = tpu.matmul %42, %44, %cst_28 {dimension_numbers = #tpu.dot_dimension_numbers<[1], [0], [0], [1], [0, 0, 1, 1], [], []>} : vector<16x32xf32>, vector<32x32xf32>, vector<16x32xf32> -> vector<16x32xf32>
    %c0_29 = arith.constant 0 : index
    %c0_30 = arith.constant 0 : index
    %c0_31 = arith.constant 0 : index
    %46 = vector.load %arg10[%c0_29, %c0_30, %c0_31] : memref<2x1x32xf32, #tpu.memory_space<vmem>>, vector<1x1x32xf32>
    %47 = vector.shape_cast %46 : vector<1x1x32xf32> to vector<1x32xf32>
    %48 = vector.broadcast %47 : vector<1x32xf32> to vector<16x32xf32>
    %49 = arith.addf %45, %48 : vector<16x32xf32>
    %cst_32 = arith.constant 0.000000e+00 : f32
    %50 = vector.broadcast %cst_32 : f32 to vector<16x32xf32>
    %51 = arith.subf %50, %49 : vector<16x32xf32>
    %52 = math.exp %51 : vector<16x32xf32>
    %cst_33 = arith.constant 1.000000e+00 : f32
    %53 = vector.broadcast %cst_33 : f32 to vector<16x32xf32>
    %54 = arith.addf %53, %52 : vector<16x32xf32>
    %55 = tpu.reciprocal %54 {approx = true} : vector<16x32xf32> -> vector<16x32xf32>
    %56 = arith.mulf %49, %55 : vector<16x32xf32>
    %c0_34 = arith.constant 0 : index
    %c0_35 = arith.constant 0 : index
    %c0_36 = arith.constant 0 : index
    %57 = vector.load %arg11[%c0_34, %c0_35, %c0_36] : memref<2x32x32xf32, #tpu.memory_space<vmem>>, vector<1x32x32xf32>
    %58 = vector.shape_cast %57 : vector<1x32x32xf32> to vector<32x32xf32>
    %cst_37 = arith.constant dense<0.000000e+00> : vector<16x32xf32>
    %59 = tpu.matmul %56, %58, %cst_37 {dimension_numbers = #tpu.dot_dimension_numbers<[1], [0], [0], [1], [0, 0, 1, 1], [], []>} : vector<16x32xf32>, vector<32x32xf32>, vector<16x32xf32> -> vector<16x32xf32>
    %c0_38 = arith.constant 0 : index
    %c0_39 = arith.constant 0 : index
    %c0_40 = arith.constant 0 : index
    %60 = vector.load %arg12[%c0_38, %c0_39, %c0_40] : memref<2x1x32xf32, #tpu.memory_space<vmem>>, vector<1x1x32xf32>
    %61 = vector.shape_cast %60 : vector<1x1x32xf32> to vector<1x32xf32>
    %62 = vector.broadcast %61 : vector<1x32xf32> to vector<16x32xf32>
    %63 = arith.addf %59, %62 : vector<16x32xf32>
    %cst_41 = arith.constant 0.000000e+00 : f32
    %64 = vector.broadcast %cst_41 : f32 to vector<16x32xf32>
    %65 = arith.subf %64, %63 : vector<16x32xf32>
    %66 = math.exp %65 : vector<16x32xf32>
    %cst_42 = arith.constant 1.000000e+00 : f32
    %67 = vector.broadcast %cst_42 : f32 to vector<16x32xf32>
    %68 = arith.addf %67, %66 : vector<16x32xf32>
    %69 = tpu.reciprocal %68 {approx = true} : vector<16x32xf32> -> vector<16x32xf32>
    %70 = arith.mulf %63, %69 : vector<16x32xf32>
    %c0_43 = arith.constant 0 : index
    %c0_44 = arith.constant 0 : index
    %c0_45 = arith.constant 0 : index
    %71 = vector.load %arg13[%c0_43, %c0_44, %c0_45] : memref<2x32x1xf32, #tpu.memory_space<vmem>>, vector<1x32x1xf32>
    %72 = vector.shape_cast %71 : vector<1x32x1xf32> to vector<32x1xf32>
    %cst_46 = arith.constant dense<0.000000e+00> : vector<16x1xf32>
    %73 = tpu.matmul %70, %72, %cst_46 {dimension_numbers = #tpu.dot_dimension_numbers<[1], [0], [0], [1], [0, 0, 1, 1], [], []>} : vector<16x32xf32>, vector<32x1xf32>, vector<16x1xf32> -> vector<16x1xf32>
    %c0_47 = arith.constant 0 : index
    %c0_48 = arith.constant 0 : index
    %c0_49 = arith.constant 0 : index
    %74 = vector.load %arg14[%c0_47, %c0_48, %c0_49] : memref<2x1x1xf32, #tpu.memory_space<vmem>>, vector<1x1x1xf32>
    %75 = vector.shape_cast %74 : vector<1x1x1xf32> to vector<1x1xf32>
    %76 = vector.broadcast %75 : vector<1x1xf32> to vector<16x1xf32>
    %77 = arith.addf %73, %76 : vector<16x1xf32>
    %78 = vector.broadcast %77 : vector<16x1xf32> to vector<16x3xf32>
    %79 = arith.mulf %78, %18 : vector<16x3xf32>
    %80 = tpu.concatenate %56, %79 in 1 : vector<16x32xf32>, vector<16x3xf32> -> vector<16x35xf32>
    %cst_50 = arith.constant dense<0.000000e+00> : vector<8x35xf32>
    %81 = tpu.matmul %5, %80, %cst_50 {dimension_numbers = #tpu.dot_dimension_numbers<[0], [0], [1], [1], [0, 1, 1, 1], [], []>} : vector<16x8xf32>, vector<16x35xf32>, vector<8x35xf32> -> vector<8x35xf32>
    %82 = vector.extract_strided_slice %81 {offsets = [0, 0], sizes = [8, 32], strides = [1, 1]} : vector<8x35xf32> to vector<8x32xf32>
    %83 = vector.extract_strided_slice %81 {offsets = [0, 32], sizes = [8, 3], strides = [1, 1]} : vector<8x35xf32> to vector<8x3xf32>
    %84 = arith.addf %1, %83 : vector<8x3xf32>
    %c0_51 = arith.constant 0 : index
    %c0_52 = arith.constant 0 : index
    %c0_53 = arith.constant 0 : index
    %85 = vector.load %arg15[%c0_51, %c0_52, %c0_53] : memref<2x32x32xf32, #tpu.memory_space<vmem>>, vector<1x32x32xf32>
    %86 = vector.shape_cast %85 : vector<1x32x32xf32> to vector<32x32xf32>
    %cst_54 = arith.constant dense<0.000000e+00> : vector<8x32xf32>
    %87 = tpu.matmul %0, %86, %cst_54 {dimension_numbers = #tpu.dot_dimension_numbers<[1], [0], [0], [1], [0, 0, 1, 1], [], []>} : vector<8x32xf32>, vector<32x32xf32>, vector<8x32xf32> -> vector<8x32xf32>
    %c0_55 = arith.constant 0 : index
    %c0_56 = arith.constant 0 : index
    %c0_57 = arith.constant 0 : index
    %88 = vector.load %arg16[%c0_55, %c0_56, %c0_57] : memref<2x32x32xf32, #tpu.memory_space<vmem>>, vector<1x32x32xf32>
    %89 = vector.shape_cast %88 : vector<1x32x32xf32> to vector<32x32xf32>
    %cst_58 = arith.constant dense<0.000000e+00> : vector<8x32xf32>
    %90 = tpu.matmul %82, %89, %cst_58 {dimension_numbers = #tpu.dot_dimension_numbers<[1], [0], [0], [1], [0, 0, 1, 1], [], []>} : vector<8x32xf32>, vector<32x32xf32>, vector<8x32xf32> -> vector<8x32xf32>
    %91 = arith.addf %87, %90 : vector<8x32xf32>
    %c0_59 = arith.constant 0 : index
    %c0_60 = arith.constant 0 : index
    %c0_61 = arith.constant 0 : index
    %92 = vector.load %arg17[%c0_59, %c0_60, %c0_61] : memref<2x1x32xf32, #tpu.memory_space<vmem>>, vector<1x1x32xf32>
    %93 = vector.shape_cast %92 : vector<1x1x32xf32> to vector<1x32xf32>
    %94 = vector.broadcast %93 : vector<1x32xf32> to vector<8x32xf32>
    %95 = arith.addf %91, %94 : vector<8x32xf32>
    %cst_62 = arith.constant 0.000000e+00 : f32
    %96 = vector.broadcast %cst_62 : f32 to vector<8x32xf32>
    %97 = arith.subf %96, %95 : vector<8x32xf32>
    %98 = math.exp %97 : vector<8x32xf32>
    %cst_63 = arith.constant 1.000000e+00 : f32
    %99 = vector.broadcast %cst_63 : f32 to vector<8x32xf32>
    %100 = arith.addf %99, %98 : vector<8x32xf32>
    %101 = tpu.reciprocal %100 {approx = true} : vector<8x32xf32> -> vector<8x32xf32>
    %102 = arith.mulf %95, %101 : vector<8x32xf32>
    %c0_64 = arith.constant 0 : index
    %c0_65 = arith.constant 0 : index
    %c0_66 = arith.constant 0 : index
    %103 = vector.load %arg18[%c0_64, %c0_65, %c0_66] : memref<2x32x32xf32, #tpu.memory_space<vmem>>, vector<1x32x32xf32>
    %104 = vector.shape_cast %103 : vector<1x32x32xf32> to vector<32x32xf32>
    %cst_67 = arith.constant dense<0.000000e+00> : vector<8x32xf32>
    %105 = tpu.matmul %102, %104, %cst_67 {dimension_numbers = #tpu.dot_dimension_numbers<[1], [0], [0], [1], [0, 0, 1, 1], [], []>} : vector<8x32xf32>, vector<32x32xf32>, vector<8x32xf32> -> vector<8x32xf32>
    %106 = arith.addf %0, %105 : vector<8x32xf32>
    %c0_68 = arith.constant 0 : index
    %c0_69 = arith.constant 0 : index
    %c0_70 = arith.constant 0 : index
    %107 = vector.load %arg19[%c0_68, %c0_69, %c0_70] : memref<2x1x32xf32, #tpu.memory_space<vmem>>, vector<1x1x32xf32>
    %108 = vector.shape_cast %107 : vector<1x1x32xf32> to vector<1x32xf32>
    %109 = vector.broadcast %108 : vector<1x32xf32> to vector<8x32xf32>
    %110 = arith.addf %106, %109 : vector<8x32xf32>
    %c1 = arith.constant 1 : index
    %c0_71 = arith.constant 0 : index
    %c0_72 = arith.constant 0 : index
    %111 = vector.load %arg5[%c1, %c0_71, %c0_72] : memref<2x32x32xf32, #tpu.memory_space<vmem>>, vector<1x32x32xf32>
    %112 = vector.shape_cast %111 : vector<1x32x32xf32> to vector<32x32xf32>
    %cst_73 = arith.constant dense<0.000000e+00> : vector<8x32xf32>
    %113 = tpu.matmul %110, %112, %cst_73 {dimension_numbers = #tpu.dot_dimension_numbers<[1], [0], [0], [1], [0, 0, 1, 1], [], []>} : vector<8x32xf32>, vector<32x32xf32>, vector<8x32xf32> -> vector<8x32xf32>
    %c1_74 = arith.constant 1 : index
    %c0_75 = arith.constant 0 : index
    %c0_76 = arith.constant 0 : index
    %114 = vector.load %arg6[%c1_74, %c0_75, %c0_76] : memref<2x32x32xf32, #tpu.memory_space<vmem>>, vector<1x32x32xf32>
    %115 = vector.shape_cast %114 : vector<1x32x32xf32> to vector<32x32xf32>
    %cst_77 = arith.constant dense<0.000000e+00> : vector<8x32xf32>
    %116 = tpu.matmul %110, %115, %cst_77 {dimension_numbers = #tpu.dot_dimension_numbers<[1], [0], [0], [1], [0, 0, 1, 1], [], []>} : vector<8x32xf32>, vector<32x32xf32>, vector<8x32xf32> -> vector<8x32xf32>
    %117 = tpu.concatenate %116, %84 in 1 : vector<8x32xf32>, vector<8x3xf32> -> vector<8x35xf32>
    %118 = tpu.concatenate %113, %84 in 1 : vector<8x32xf32>, vector<8x3xf32> -> vector<8x35xf32>
    %cst_78 = arith.constant dense<0.000000e+00> : vector<16x35xf32>
    %119 = tpu.matmul %3, %117, %cst_78 {dimension_numbers = #tpu.dot_dimension_numbers<[1], [0], [0], [1], [0, 0, 1, 1], [], []>} : vector<16x8xf32>, vector<8x35xf32>, vector<16x35xf32> -> vector<16x35xf32>
    %cst_79 = arith.constant dense<0.000000e+00> : vector<16x35xf32>
    %120 = tpu.matmul %5, %118, %cst_79 {dimension_numbers = #tpu.dot_dimension_numbers<[1], [0], [0], [1], [0, 0, 1, 1], [], []>} : vector<16x8xf32>, vector<8x35xf32>, vector<16x35xf32> -> vector<16x35xf32>
    %121 = vector.extract_strided_slice %119 {offsets = [0, 32], sizes = [16, 3], strides = [1, 1]} : vector<16x35xf32> to vector<16x3xf32>
    %122 = vector.extract_strided_slice %120 {offsets = [0, 32], sizes = [16, 3], strides = [1, 1]} : vector<16x35xf32> to vector<16x3xf32>
    %123 = arith.subf %121, %122 : vector<16x3xf32>
    %124 = arith.mulf %123, %123 : vector<16x3xf32>
    %cst_80 = arith.constant dense<0.000000e+00> : vector<16xf32>
    %125 = vector.multi_reduction <add>, %124, %cst_80 [1] : vector<16x3xf32> to vector<16xf32>
    %126 = vector.shape_cast %125 : vector<16xf32> to vector<16x1xf32>
    %127 = math.sqrt %126 : vector<16x1xf32>
    %128 = vector.extract_strided_slice %120 {offsets = [0, 0], sizes = [16, 32], strides = [1, 1]} : vector<16x35xf32> to vector<16x32xf32>
    %129 = vector.extract_strided_slice %119 {offsets = [0, 0], sizes = [16, 32], strides = [1, 1]} : vector<16x35xf32> to vector<16x32xf32>
    %130 = arith.addf %128, %129 : vector<16x32xf32>
    %c1_81 = arith.constant 1 : index
    %c0_82 = arith.constant 0 : index
    %c0_83 = arith.constant 0 : index
    %131 = vector.load %arg7[%c1_81, %c0_82, %c0_83] : memref<2x1x32xf32, #tpu.memory_space<vmem>>, vector<1x1x32xf32>
    %132 = vector.shape_cast %131 : vector<1x1x32xf32> to vector<1x32xf32>
    %133 = vector.broadcast %127 : vector<16x1xf32> to vector<16x32xf32>
    %134 = vector.broadcast %132 : vector<1x32xf32> to vector<16x32xf32>
    %135 = arith.mulf %133, %134 : vector<16x32xf32>
    %136 = arith.addf %130, %135 : vector<16x32xf32>
    %c1_84 = arith.constant 1 : index
    %c0_85 = arith.constant 0 : index
    %c0_86 = arith.constant 0 : index
    %137 = vector.load %arg8[%c1_84, %c0_85, %c0_86] : memref<2x1x32xf32, #tpu.memory_space<vmem>>, vector<1x1x32xf32>
    %138 = vector.shape_cast %137 : vector<1x1x32xf32> to vector<1x32xf32>
    %139 = vector.broadcast %138 : vector<1x32xf32> to vector<16x32xf32>
    %140 = arith.addf %136, %139 : vector<16x32xf32>
    %cst_87 = arith.constant 0.000000e+00 : f32
    %141 = vector.broadcast %cst_87 : f32 to vector<16x32xf32>
    %142 = arith.subf %141, %140 : vector<16x32xf32>
    %143 = math.exp %142 : vector<16x32xf32>
    %cst_88 = arith.constant 1.000000e+00 : f32
    %144 = vector.broadcast %cst_88 : f32 to vector<16x32xf32>
    %145 = arith.addf %144, %143 : vector<16x32xf32>
    %146 = tpu.reciprocal %145 {approx = true} : vector<16x32xf32> -> vector<16x32xf32>
    %147 = arith.mulf %140, %146 : vector<16x32xf32>
    %c1_89 = arith.constant 1 : index
    %c0_90 = arith.constant 0 : index
    %c0_91 = arith.constant 0 : index
    %148 = vector.load %arg9[%c1_89, %c0_90, %c0_91] : memref<2x32x32xf32, #tpu.memory_space<vmem>>, vector<1x32x32xf32>
    %149 = vector.shape_cast %148 : vector<1x32x32xf32> to vector<32x32xf32>
    %cst_92 = arith.constant dense<0.000000e+00> : vector<16x32xf32>
    %150 = tpu.matmul %147, %149, %cst_92 {dimension_numbers = #tpu.dot_dimension_numbers<[1], [0], [0], [1], [0, 0, 1, 1], [], []>} : vector<16x32xf32>, vector<32x32xf32>, vector<16x32xf32> -> vector<16x32xf32>
    %c1_93 = arith.constant 1 : index
    %c0_94 = arith.constant 0 : index
    %c0_95 = arith.constant 0 : index
    %151 = vector.load %arg10[%c1_93, %c0_94, %c0_95] : memref<2x1x32xf32, #tpu.memory_space<vmem>>, vector<1x1x32xf32>
    %152 = vector.shape_cast %151 : vector<1x1x32xf32> to vector<1x32xf32>
    %153 = vector.broadcast %152 : vector<1x32xf32> to vector<16x32xf32>
    %154 = arith.addf %150, %153 : vector<16x32xf32>
    %cst_96 = arith.constant 0.000000e+00 : f32
    %155 = vector.broadcast %cst_96 : f32 to vector<16x32xf32>
    %156 = arith.subf %155, %154 : vector<16x32xf32>
    %157 = math.exp %156 : vector<16x32xf32>
    %cst_97 = arith.constant 1.000000e+00 : f32
    %158 = vector.broadcast %cst_97 : f32 to vector<16x32xf32>
    %159 = arith.addf %158, %157 : vector<16x32xf32>
    %160 = tpu.reciprocal %159 {approx = true} : vector<16x32xf32> -> vector<16x32xf32>
    %161 = arith.mulf %154, %160 : vector<16x32xf32>
    %c1_98 = arith.constant 1 : index
    %c0_99 = arith.constant 0 : index
    %c0_100 = arith.constant 0 : index
    %162 = vector.load %arg11[%c1_98, %c0_99, %c0_100] : memref<2x32x32xf32, #tpu.memory_space<vmem>>, vector<1x32x32xf32>
    %163 = vector.shape_cast %162 : vector<1x32x32xf32> to vector<32x32xf32>
    %cst_101 = arith.constant dense<0.000000e+00> : vector<16x32xf32>
    %164 = tpu.matmul %161, %163, %cst_101 {dimension_numbers = #tpu.dot_dimension_numbers<[1], [0], [0], [1], [0, 0, 1, 1], [], []>} : vector<16x32xf32>, vector<32x32xf32>, vector<16x32xf32> -> vector<16x32xf32>
    %c1_102 = arith.constant 1 : index
    %c0_103 = arith.constant 0 : index
    %c0_104 = arith.constant 0 : index
    %165 = vector.load %arg12[%c1_102, %c0_103, %c0_104] : memref<2x1x32xf32, #tpu.memory_space<vmem>>, vector<1x1x32xf32>
    %166 = vector.shape_cast %165 : vector<1x1x32xf32> to vector<1x32xf32>
    %167 = vector.broadcast %166 : vector<1x32xf32> to vector<16x32xf32>
    %168 = arith.addf %164, %167 : vector<16x32xf32>
    %cst_105 = arith.constant 0.000000e+00 : f32
    %169 = vector.broadcast %cst_105 : f32 to vector<16x32xf32>
    %170 = arith.subf %169, %168 : vector<16x32xf32>
    %171 = math.exp %170 : vector<16x32xf32>
    %cst_106 = arith.constant 1.000000e+00 : f32
    %172 = vector.broadcast %cst_106 : f32 to vector<16x32xf32>
    %173 = arith.addf %172, %171 : vector<16x32xf32>
    %174 = tpu.reciprocal %173 {approx = true} : vector<16x32xf32> -> vector<16x32xf32>
    %175 = arith.mulf %168, %174 : vector<16x32xf32>
    %c1_107 = arith.constant 1 : index
    %c0_108 = arith.constant 0 : index
    %c0_109 = arith.constant 0 : index
    %176 = vector.load %arg13[%c1_107, %c0_108, %c0_109] : memref<2x32x1xf32, #tpu.memory_space<vmem>>, vector<1x32x1xf32>
    %177 = vector.shape_cast %176 : vector<1x32x1xf32> to vector<32x1xf32>
    %cst_110 = arith.constant dense<0.000000e+00> : vector<16x1xf32>
    %178 = tpu.matmul %175, %177, %cst_110 {dimension_numbers = #tpu.dot_dimension_numbers<[1], [0], [0], [1], [0, 0, 1, 1], [], []>} : vector<16x32xf32>, vector<32x1xf32>, vector<16x1xf32> -> vector<16x1xf32>
    %c1_111 = arith.constant 1 : index
    %c0_112 = arith.constant 0 : index
    %c0_113 = arith.constant 0 : index
    %179 = vector.load %arg14[%c1_111, %c0_112, %c0_113] : memref<2x1x1xf32, #tpu.memory_space<vmem>>, vector<1x1x1xf32>
    %180 = vector.shape_cast %179 : vector<1x1x1xf32> to vector<1x1xf32>
    %181 = vector.broadcast %180 : vector<1x1xf32> to vector<16x1xf32>
    %182 = arith.addf %178, %181 : vector<16x1xf32>
    %183 = vector.broadcast %182 : vector<16x1xf32> to vector<16x3xf32>
    %184 = arith.mulf %183, %123 : vector<16x3xf32>
    %185 = tpu.concatenate %161, %184 in 1 : vector<16x32xf32>, vector<16x3xf32> -> vector<16x35xf32>
    %cst_114 = arith.constant dense<0.000000e+00> : vector<8x35xf32>
    %186 = tpu.matmul %5, %185, %cst_114 {dimension_numbers = #tpu.dot_dimension_numbers<[0], [0], [1], [1], [0, 1, 1, 1], [], []>} : vector<16x8xf32>, vector<16x35xf32>, vector<8x35xf32> -> vector<8x35xf32>
    %187 = vector.extract_strided_slice %186 {offsets = [0, 0], sizes = [8, 32], strides = [1, 1]} : vector<8x35xf32> to vector<8x32xf32>
    %188 = vector.extract_strided_slice %186 {offsets = [0, 32], sizes = [8, 3], strides = [1, 1]} : vector<8x35xf32> to vector<8x3xf32>
    %189 = arith.addf %84, %188 : vector<8x3xf32>
    %c1_115 = arith.constant 1 : index
    %c0_116 = arith.constant 0 : index
    %c0_117 = arith.constant 0 : index
    %190 = vector.load %arg15[%c1_115, %c0_116, %c0_117] : memref<2x32x32xf32, #tpu.memory_space<vmem>>, vector<1x32x32xf32>
    %191 = vector.shape_cast %190 : vector<1x32x32xf32> to vector<32x32xf32>
    %cst_118 = arith.constant dense<0.000000e+00> : vector<8x32xf32>
    %192 = tpu.matmul %110, %191, %cst_118 {dimension_numbers = #tpu.dot_dimension_numbers<[1], [0], [0], [1], [0, 0, 1, 1], [], []>} : vector<8x32xf32>, vector<32x32xf32>, vector<8x32xf32> -> vector<8x32xf32>
    %c1_119 = arith.constant 1 : index
    %c0_120 = arith.constant 0 : index
    %c0_121 = arith.constant 0 : index
    %193 = vector.load %arg16[%c1_119, %c0_120, %c0_121] : memref<2x32x32xf32, #tpu.memory_space<vmem>>, vector<1x32x32xf32>
    %194 = vector.shape_cast %193 : vector<1x32x32xf32> to vector<32x32xf32>
    %cst_122 = arith.constant dense<0.000000e+00> : vector<8x32xf32>
    %195 = tpu.matmul %187, %194, %cst_122 {dimension_numbers = #tpu.dot_dimension_numbers<[1], [0], [0], [1], [0, 0, 1, 1], [], []>} : vector<8x32xf32>, vector<32x32xf32>, vector<8x32xf32> -> vector<8x32xf32>
    %196 = arith.addf %192, %195 : vector<8x32xf32>
    %c1_123 = arith.constant 1 : index
    %c0_124 = arith.constant 0 : index
    %c0_125 = arith.constant 0 : index
    %197 = vector.load %arg17[%c1_123, %c0_124, %c0_125] : memref<2x1x32xf32, #tpu.memory_space<vmem>>, vector<1x1x32xf32>
    %198 = vector.shape_cast %197 : vector<1x1x32xf32> to vector<1x32xf32>
    %199 = vector.broadcast %198 : vector<1x32xf32> to vector<8x32xf32>
    %200 = arith.addf %196, %199 : vector<8x32xf32>
    %cst_126 = arith.constant 0.000000e+00 : f32
    %201 = vector.broadcast %cst_126 : f32 to vector<8x32xf32>
    %202 = arith.subf %201, %200 : vector<8x32xf32>
    %203 = math.exp %202 : vector<8x32xf32>
    %cst_127 = arith.constant 1.000000e+00 : f32
    %204 = vector.broadcast %cst_127 : f32 to vector<8x32xf32>
    %205 = arith.addf %204, %203 : vector<8x32xf32>
    %206 = tpu.reciprocal %205 {approx = true} : vector<8x32xf32> -> vector<8x32xf32>
    %207 = arith.mulf %200, %206 : vector<8x32xf32>
    %c1_128 = arith.constant 1 : index
    %c0_129 = arith.constant 0 : index
    %c0_130 = arith.constant 0 : index
    %208 = vector.load %arg18[%c1_128, %c0_129, %c0_130] : memref<2x32x32xf32, #tpu.memory_space<vmem>>, vector<1x32x32xf32>
    %209 = vector.shape_cast %208 : vector<1x32x32xf32> to vector<32x32xf32>
    %cst_131 = arith.constant dense<0.000000e+00> : vector<8x32xf32>
    %210 = tpu.matmul %207, %209, %cst_131 {dimension_numbers = #tpu.dot_dimension_numbers<[1], [0], [0], [1], [0, 0, 1, 1], [], []>} : vector<8x32xf32>, vector<32x32xf32>, vector<8x32xf32> -> vector<8x32xf32>
    %211 = arith.addf %110, %210 : vector<8x32xf32>
    %c1_132 = arith.constant 1 : index
    %c0_133 = arith.constant 0 : index
    %c0_134 = arith.constant 0 : index
    %212 = vector.load %arg19[%c1_132, %c0_133, %c0_134] : memref<2x1x32xf32, #tpu.memory_space<vmem>>, vector<1x1x32xf32>
    %213 = vector.shape_cast %212 : vector<1x1x32xf32> to vector<1x32xf32>
    %214 = vector.broadcast %213 : vector<1x32xf32> to vector<8x32xf32>
    %215 = arith.addf %211, %214 : vector<8x32xf32>
    %216 = tpu.concatenate %215, %189 in 1 : vector<8x32xf32>, vector<8x3xf32> -> vector<8x35xf32>
    %c0_135 = arith.constant 0 : index
    %c0_136 = arith.constant 0 : index
    %217 = vector.load %arg20[%c0_135, %c0_136] : memref<8x35xf32, #tpu.memory_space<vmem>>, vector<8x35xf32>
    tpu.vector_store %arg20[%c0_135, %c0_136], %216 {strides = array<i32>} : memref<8x35xf32, #tpu.memory_space<vmem>>, vector<8x35xf32>,
    return
  }
  func.func @transform_0(%arg0: i32) -> (i32, i32) {
    %c0_i32 = arith.constant 0 : i32
    %c0_i32_0 = arith.constant 0 : i32
    %c0_i32_1 = arith.constant 0 : i32
    return %c0_i32, %c0_i32_0 : i32, i32
  }
  func.func @transform_1(%arg0: i32) -> (i32, i32) {
    %c0_i32 = arith.constant 0 : i32
    %c0_i32_0 = arith.constant 0 : i32
    %c0_i32_1 = arith.constant 0 : i32
    return %c0_i32, %c0_i32_0 : i32, i32
  }
  func.func @transform_2(%arg0: i32) -> (i32, i32) {
    %c0_i32 = arith.constant 0 : i32
    %c0_i32_0 = arith.constant 0 : i32
    %c0_i32_1 = arith.constant 0 : i32
    return %c0_i32, %c0_i32_0 : i32, i32
  }
  func.func @transform_3(%arg0: i32) -> (i32, i32) {
    %c0_i32 = arith.constant 0 : i32
    %c0_i32_0 = arith.constant 0 : i32
    %c0_i32_1 = arith.constant 0 : i32
    return %c0_i32, %c0_i32_0 : i32, i32
  }
  func.func @transform_4(%arg0: i32) -> (i32, i32, i32) {
    %c0_i32 = arith.constant 0 : i32
    %c0_i32_0 = arith.constant 0 : i32
    %c0_i32_1 = arith.constant 0 : i32
    %c0_i32_2 = arith.constant 0 : i32
    return %c0_i32, %c0_i32_0, %c0_i32_1 : i32, i32, i32
  }
  func.func @transform_5(%arg0: i32) -> (i32, i32, i32) {
    %c0_i32 = arith.constant 0 : i32
    %c0_i32_0 = arith.constant 0 : i32
    %c0_i32_1 = arith.constant 0 : i32
    %c0_i32_2 = arith.constant 0 : i32
    return %c0_i32, %c0_i32_0, %c0_i32_1 : i32, i32, i32
  }
  func.func @transform_6(%arg0: i32) -> (i32, i32, i32) {
    %c0_i32 = arith.constant 0 : i32
    %c0_i32_0 = arith.constant 0 : i32
    %c0_i32_1 = arith.constant 0 : i32
    %c0_i32_2 = arith.constant 0 : i32
    return %c0_i32, %c0_i32_0, %c0_i32_1 : i32, i32, i32
  }
  func.func @transform_7(%arg0: i32) -> (i32, i32, i32) {
    %c0_i32 = arith.constant 0 : i32
    %c0_i32_0 = arith.constant 0 : i32
    %c0_i32_1 = arith.constant 0 : i32
    %c0_i32_2 = arith.constant 0 : i32
    return %c0_i32, %c0_i32_0, %c0_i32_1 : i32, i32, i32
  }
  func.func @transform_8(%arg0: i32) -> (i32, i32, i32) {
    %c0_i32 = arith.constant 0 : i32
    %c0_i32_0 = arith.constant 0 : i32
    %c0_i32_1 = arith.constant 0 : i32
    %c0_i32_2 = arith.constant 0 : i32
    return %c0_i32, %c0_i32_0, %c0_i32_1 : i32, i32, i32
  }
  func.func @transform_9(%arg0: i32) -> (i32, i32, i32) {
    %c0_i32 = arith.constant 0 : i32
    %c0_i32_0 = arith.constant 0 : i32
    %c0_i32_1 = arith.constant 0 : i32
    %c0_i32_2 = arith.constant 0 : i32
    return %c0_i32, %c0_i32_0, %c0_i32_1 : i32, i32, i32
  }
  func.func @transform_10(%arg0: i32) -> (i32, i32, i32) {
    %c0_i32 = arith.constant 0 : i32
    %c0_i32_0 = arith.constant 0 : i32
    %c0_i32_1 = arith.constant 0 : i32
    %c0_i32_2 = arith.constant 0 : i32
    return %c0_i32, %c0_i32_0, %c0_i32_1 : i32, i32, i32
  }
  func.func @transform_11(%arg0: i32) -> (i32, i32, i32) {
    %c0_i32 = arith.constant 0 : i32
    %c0_i32_0 = arith.constant 0 : i32
    %c0_i32_1 = arith.constant 0 : i32
    %c0_i32_2 = arith.constant 0 : i32
    return %c0_i32, %c0_i32_0, %c0_i32_1 : i32, i32, i32
  }
  func.func @transform_12(%arg0: i32) -> (i32, i32, i32) {
    %c0_i32 = arith.constant 0 : i32
    %c0_i32_0 = arith.constant 0 : i32
    %c0_i32_1 = arith.constant 0 : i32
    %c0_i32_2 = arith.constant 0 : i32
    return %c0_i32, %c0_i32_0, %c0_i32_1 : i32, i32, i32
  }
  func.func @transform_13(%arg0: i32) -> (i32, i32, i32) {
    %c0_i32 = arith.constant 0 : i32
    %c0_i32_0 = arith.constant 0 : i32
    %c0_i32_1 = arith.constant 0 : i32
    %c0_i32_2 = arith.constant 0 : i32
    return %c0_i32, %c0_i32_0, %c0_i32_1 : i32, i32, i32
  }
  func.func @transform_14(%arg0: i32) -> (i32, i32, i32) {
    %c0_i32 = arith.constant 0 : i32
    %c0_i32_0 = arith.constant 0 : i32
    %c0_i32_1 = arith.constant 0 : i32
    %c0_i32_2 = arith.constant 0 : i32
    return %c0_i32, %c0_i32_0, %c0_i32_1 : i32, i32, i32
  }
  func.func @transform_15(%arg0: i32) -> (i32, i32, i32) {
    %c0_i32 = arith.constant 0 : i32
    %c0_i32_0 = arith.constant 0 : i32
    %c0_i32_1 = arith.constant 0 : i32
    %c0_i32_2 = arith.constant 0 : i32
    return %c0_i32, %c0_i32_0, %c0_i32_1 : i32, i32, i32
  }
  func.func @transform_16(%arg0: i32) -> (i32, i32, i32) {
    %c0_i32 = arith.constant 0 : i32
    %c0_i32_0 = arith.constant 0 : i32
    %c0_i32_1 = arith.constant 0 : i32
    %c0_i32_2 = arith.constant 0 : i32
    return %c0_i32, %c0_i32_0, %c0_i32_1 : i32, i32, i32
  }
  func.func @transform_17(%arg0: i32) -> (i32, i32, i32) {
    %c0_i32 = arith.constant 0 : i32
    %c0_i32_0 = arith.constant 0 : i32
    %c0_i32_1 = arith.constant 0 : i32
    %c0_i32_2 = arith.constant 0 : i32
    return %c0_i32, %c0_i32_0, %c0_i32_1 : i32, i32, i32
  }
  func.func @transform_18(%arg0: i32) -> (i32, i32, i32) {
    %c0_i32 = arith.constant 0 : i32
    %c0_i32_0 = arith.constant 0 : i32
    %c0_i32_1 = arith.constant 0 : i32
    %c0_i32_2 = arith.constant 0 : i32
    return %c0_i32, %c0_i32_0, %c0_i32_1 : i32, i32, i32
  }
  func.func @transform_19(%arg0: i32) -> (i32, i32) {
    %c0_i32 = arith.constant 0 : i32
    %c0_i32_0 = arith.constant 0 : i32
    %c0_i32_1 = arith.constant 0 : i32
    return %c0_i32, %c0_i32_0 : i32, i32
  }
}

</mosaic_0001>

<llo_original>
// kernel: tpu_custom_call.1
$region0: #{tpu_custom_call.1}
  #allocation0 [shape = 'u32[]', space=smem, size = 0x4, offset = 0x4, fixed_abs, tag = 'smem constant byte address 0x4 - core index']
  #allocation1 [shape = 'u32[144,128]{1,0:T(1,128)}', space=vmem, size = 0x12000, scoped, tag = 'internal scratch']
  %s0 = inlined_call_operand.hbm [shape: f32[8,32], index: 0, kind: input, shape index: {}]
  %s1 = inlined_call_operand.vmem [shape: f32[8,3], index: 1, kind: input, shape index: {}]
  %s2 = inlined_call_operand.vmem [shape: bf16[16,8], index: 2, kind: input, shape index: {}]
  %s3 = inlined_call_operand.vmem [shape: bf16[16,8], index: 3, kind: input, shape index: {}]
  %s4 = inlined_call_operand.vmem [shape: f32[2,32,32], index: 4, kind: input, shape index: {}]
  %s5 = inlined_call_operand.hbm [shape: f32[2,32,32], index: 5, kind: input, shape index: {}]
  %s6 = inlined_call_operand.hbm [shape: f32[2,1,32], index: 6, kind: input, shape index: {}]
  %s7 = inlined_call_operand.hbm [shape: f32[2,1,32], index: 7, kind: input, shape index: {}]
  %s8 = inlined_call_operand.hbm [shape: f32[2,32,32], index: 8, kind: input, shape index: {}]
  %s9 = inlined_call_operand.hbm [shape: f32[2,1,32], index: 9, kind: input, shape index: {}]
  %s10 = inlined_call_operand.hbm [shape: f32[2,32,32], index: 10, kind: input, shape index: {}]
  %s11 = inlined_call_operand.hbm [shape: f32[2,1,32], index: 11, kind: input, shape index: {}]
  %s12 = inlined_call_operand.vmem [shape: f32[2,32,1], index: 12, kind: input, shape index: {}]
  %s13 = inlined_call_operand.vmem [shape: f32[2,1,1], index: 13, kind: input, shape index: {}]
  %s14 = inlined_call_operand.vmem [shape: f32[2,32,32], index: 14, kind: input, shape index: {}]
  %s15 = inlined_call_operand.hbm [shape: f32[2,32,32], index: 15, kind: input, shape index: {}]
  %s16 = inlined_call_operand.vmem [shape: f32[2,1,32], index: 16, kind: input, shape index: {}]
  %s17 = inlined_call_operand.hbm [shape: f32[2,32,32], index: 17, kind: input, shape index: {}]
  %s18 = inlined_call_operand.vmem [shape: f32[2,1,32], index: 18, kind: input, shape index: {}]
  %s19 = inlined_call_operand.hbm [shape: f32[8,35], index: 19, kind: output, shape index: {}]
  %s20 = sld [smem:[#allocation0]]
  $region126: #{tpu_custom_call.1} parent=0
    _
  %s22 = ssub.s32 1, %s20
  %s23 = scalar_select 0, %s22, %s20
  $region1: #{tpu_custom_call.1} parent=0
    #allocation2 [shape = 'u8[4096]{0}', space=vmem, size = 0x1000, scoped, tag = 'input window, operand 0, single buffered']
    #allocation3 [shape = 's32[1]{0}', space=sflag, size = 0x4, scoped, tag = 'scoped memory for tpu_custom_call.1']
    #allocation4 [shape = 's32[1]{0}', space=sflag, size = 0x4, scoped, tag = 'scoped memory for tpu_custom_call.1']
    #allocation5 [shape = 'u8[32768]{0}', space=vmem, size = 0x8000, scoped, tag = 'input window, operand 5, single buffered']
    #allocation6 [shape = 's32[1]{0}', space=sflag, size = 0x4, scoped, tag = 'scoped memory for tpu_custom_call.1']
    #allocation7 [shape = 'u8[1024]{0}', space=vmem, size = 0x400, scoped, tag = 'input window, operand 6, single buffered']
    #allocation8 [shape = 'u8[1024]{0}', space=vmem, size = 0x400, scoped, tag = 'input window, operand 7, single buffered']
    #allocation9 [shape = 's32[1]{0}', space=sflag, size = 0x4, scoped, tag = 'scoped memory for tpu_custom_call.1']
    #allocation10 [shape = 'u8[32768]{0}', space=vmem, size = 0x8000, scoped, tag = 'input window, operand 8, single buffered']
    #allocation11 [shape = 'u8[1024]{0}', space=vmem, size = 0x400, scoped, tag = 'input window, operand 9, single buffered']
    #allocation12 [shape = 's32[1]{0}', space=sflag, size = 0x4, scoped, tag = 'scoped memory for tpu_custom_call.1']
    #allocation13 [shape = 'u8[32768]{0}', space=vmem, size = 0x8000, scoped, tag = 'input window, operand 10, single buffered']
    #allocation14 [shape = 'u8[1024]{0}', space=vmem, size = 0x400, scoped, tag = 'input window, operand 11, single buffered']
    #allocation15 [shape = 's32[1]{0}', space=sflag, size = 0x4, scoped, tag = 'scoped memory for tpu_custom_call.1']
    #allocation16 [shape = 'u8[32768]{0}', space=vmem, size = 0x8000, scoped, tag = 'input window, operand 15, single buffered']
    #allocation17 [shape = 'u8[32768]{0}', space=vmem, size = 0x8000, scoped, tag = 'input window, operand 17, single buffered']
    #allocation18 [shape = 's32[1]{0}', space=sflag, size = 0x4, scoped, tag = 'scoped memory for tpu_custom_call.1']
    #allocation19 [shape = 'u8[4096]{0}', space=vmem, size = 0x1000, scoped, tag = 'output window, operand 0, single buffered']
    %24 = vsyncpa [#allocation3], 0
    %25 = vsyncpa [#allocation6], 0
    %26 = vsyncpa [#allocation9], 0
    %27 = vsyncpa [#allocation12], 0
    %28 = vsyncpa [#allocation15], 0
    %29 = vsyncpa [#allocation18], 0
    %30 = vsyncpa [#allocation4], 0
    // Predicated region
    $region2: #{tpu_custom_call.1} parent=1 // pred_check
      _
    $region3: #{tpu_custom_call.1} parent=1 // pred_check_branch
      %32 = sbr.rel (0) target = $region5
    $region4: #{tpu_custom_call.1} parent=1 // pred_region
      %s34 = ssub.s32 128, 128
      %35 = vsyncadd [#allocation3], %s34
      %s37 = sshll.u32 [#allocation2], 4
      %s38 = int_to_ptr.vmem [resolvable:$true] %s37
      %40 = dma.hbm_to_vmem [thread:$0]  %s0, 128, %s38, [#allocation3]
    $region5: #{tpu_custom_call.1} parent=1 // pred_fallthru
      _
    // Predicated region
    $region6: #{tpu_custom_call.1} parent=1 // pred_check
      _
    $region7: #{tpu_custom_call.1} parent=1 // pred_check_branch
      %42 = sbr.rel (0) target = $region9
    $region8: #{tpu_custom_call.1} parent=1 // pred_region
      _
    $region9: #{tpu_custom_call.1} parent=1 // pred_fallthru
      _
    // Predicated region
    $region10: #{tpu_custom_call.1} parent=1 // pred_check
      _
    $region11: #{tpu_custom_call.1} parent=1 // pred_check_branch
      %44 = sbr.rel (0) target = $region13
    $region12: #{tpu_custom_call.1} parent=1 // pred_region
      _
    $region13: #{tpu_custom_call.1} parent=1 // pred_fallthru
      _
    // Predicated region
    $region14: #{tpu_custom_call.1} parent=1 // pred_check
      _
    $region15: #{tpu_custom_call.1} parent=1 // pred_check_branch
      %46 = sbr.rel (0) target = $region17
    $region16: #{tpu_custom_call.1} parent=1 // pred_region
      _
    $region17: #{tpu_custom_call.1} parent=1 // pred_fallthru
      _
    // Predicated region
    $region18: #{tpu_custom_call.1} parent=1 // pred_check
      _
    $region19: #{tpu_custom_call.1} parent=1 // pred_check_branch
      %48 = sbr.rel (0) target = $region21
    $region20: #{tpu_custom_call.1} parent=1 // pred_region
      _
    $region21: #{tpu_custom_call.1} parent=1 // pred_fallthru
      _
    // Predicated region
    $region22: #{tpu_custom_call.1} parent=1 // pred_check
      _
    $region23: #{tpu_custom_call.1} parent=1 // pred_check_branch
      %50 = sbr.rel (0) target = $region25
    $region24: #{tpu_custom_call.1} parent=1 // pred_region
      %s52 = ssub.s32 1024, 1024
      %53 = vsyncadd [#allocation6], %s52
      %s54 = sshll.u32 [#allocation5], 4
      %s55 = int_to_ptr.vmem [resolvable:$true] %s54
      %60 = dma.hbm_to_vmem [thread:$0]  %s5, 1024, %s55, [#allocation6], 128, 128, 8
    $region25: #{tpu_custom_call.1} parent=1 // pred_fallthru
      _
    // Predicated region
    $region26: #{tpu_custom_call.1} parent=1 // pred_check
      _
    $region27: #{tpu_custom_call.1} parent=1 // pred_check_branch
      %62 = sbr.rel (0) target = $region29
    $region28: #{tpu_custom_call.1} parent=1 // pred_region
      %s64 = ssub.s32 32, 32
      %65 = vsyncadd [#allocation6], %s64
      %s66 = sshll.u32 [#allocation7], 4
      %s67 = int_to_ptr.vmem [resolvable:$true] %s66
      %72 = dma.hbm_to_vmem [thread:$0]  %s6, 32, %s67, [#allocation6], 16, 16, 1
    $region29: #{tpu_custom_call.1} parent=1 // pred_fallthru
      _
    // Predicated region
    $region30: #{tpu_custom_call.1} parent=1 // pred_check
      _
    $region31: #{tpu_custom_call.1} parent=1 // pred_check_branch
      %74 = sbr.rel (0) target = $region33
    $region32: #{tpu_custom_call.1} parent=1 // pred_region
      %s76 = ssub.s32 32, 32
      %77 = vsyncadd [#allocation9], %s76
      %s78 = sshll.u32 [#allocation8], 4
      %s79 = int_to_ptr.vmem [resolvable:$true] %s78
      %84 = dma.hbm_to_vmem [thread:$0]  %s7, 32, %s79, [#allocation9], 16, 16, 1
    $region33: #{tpu_custom_call.1} parent=1 // pred_fallthru
      _
    // Predicated region
    $region34: #{tpu_custom_call.1} parent=1 // pred_check
      _
    $region35: #{tpu_custom_call.1} parent=1 // pred_check_branch
      %86 = sbr.rel (0) target = $region37
    $region36: #{tpu_custom_call.1} parent=1 // pred_region
      %s88 = ssub.s32 1024, 1024
      %89 = vsyncadd [#allocation9], %s88
      %s90 = sshll.u32 [#allocation10], 4
      %s91 = int_to_ptr.vmem [resolvable:$true] %s90
      %96 = dma.hbm_to_vmem [thread:$0]  %s8, 1024, %s91, [#allocation9], 128, 128, 8
    $region37: #{tpu_custom_call.1} parent=1 // pred_fallthru
      _
    // Predicated region
    $region38: #{tpu_custom_call.1} parent=1 // pred_check
      _
    $region39: #{tpu_custom_call.1} parent=1 // pred_check_branch
      %98 = sbr.rel (0) target = $region41
    $region40: #{tpu_custom_call.1} parent=1 // pred_region
      %s100 = ssub.s32 32, 32
      %101 = vsyncadd [#allocation12], %s100
      %s102 = sshll.u32 [#allocation11], 4
      %s103 = int_to_ptr.vmem [resolvable:$true] %s102
      %108 = dma.hbm_to_vmem [thread:$0]  %s9, 32, %s103, [#allocation12], 16, 16, 1
    $region41: #{tpu_custom_call.1} parent=1 // pred_fallthru
      _
    // Predicated region
    $region42: #{tpu_custom_call.1} parent=1 // pred_check
      _
    $region43: #{tpu_custom_call.1} parent=1 // pred_check_branch
      %110 = sbr.rel (0) target = $region45
    $region44: #{tpu_custom_call.1} parent=1 // pred_region
      %s112 = ssub.s32 1024, 1024
      %113 = vsyncadd [#allocation12], %s112
      %s114 = sshll.u32 [#allocation13], 4
      %s115 = int_to_ptr.vmem [resolvable:$true] %s114
      %120 = dma.hbm_to_vmem [thread:$0]  %s10, 1024, %s115, [#allocation12], 128, 128, 8
    $region45: #{tpu_custom_call.1} parent=1 // pred_fallthru
      _
    // Predicated region
    $region46: #{tpu_custom_call.1} parent=1 // pred_check
      _
    $region47: #{tpu_custom_call.1} parent=1 // pred_check_branch
      %122 = sbr.rel (0) target = $region49
    $region48: #{tpu_custom_call.1} parent=1 // pred_region
      %s124 = ssub.s32 32, 32
      %125 = vsyncadd [#allocation15], %s124
      %s126 = sshll.u32 [#allocation14], 4
      %s127 = int_to_ptr.vmem [resolvable:$true] %s126
      %132 = dma.hbm_to_vmem [thread:$0]  %s11, 32, %s127, [#allocation15], 16, 16, 1
    $region49: #{tpu_custom_call.1} parent=1 // pred_fallthru
      _
    // Predicated region
    $region50: #{tpu_custom_call.1} parent=1 // pred_check
      _
    $region51: #{tpu_custom_call.1} parent=1 // pred_check_branch
      %134 = sbr.rel (0) target = $region53
    $region52: #{tpu_custom_call.1} parent=1 // pred_region
      _
    $region53: #{tpu_custom_call.1} parent=1 // pred_fallthru
      _
    // Predicated region
    $region54: #{tpu_custom_call.1} parent=1 // pred_check
      _
    $region55: #{tpu_custom_call.1} parent=1 // pred_check_branch
      %136 = sbr.rel (0) target = $region57
    $region56: #{tpu_custom_call.1} parent=1 // pred_region
      _
    $region57: #{tpu_custom_call.1} parent=1 // pred_fallthru
      _
    // Predicated region
    $region58: #{tpu_custom_call.1} parent=1 // pred_check
      _
    $region59: #{tpu_custom_call.1} parent=1 // pred_check_branch
      %138 = sbr.rel (0) target = $region61
    $region60: #{tpu_custom_call.1} parent=1 // pred_region
      _
    $region61: #{tpu_custom_call.1} parent=1 // pred_fallthru
      _
    // Predicated region
    $region62: #{tpu_custom_call.1} parent=1 // pred_check
      _
    $region63: #{tpu_custom_call.1} parent=1 // pred_check_branch
      %140 = sbr.rel (0) target = $region65
    $region64: #{tpu_custom_call.1} parent=1 // pred_region
      %s142 = ssub.s32 1024, 1024
      %143 = vsyncadd [#allocation15], %s142
      %s144 = sshll.u32 [#allocation16], 4
      %s145 = int_to_ptr.vmem [resolvable:$true] %s144
      %150 = dma.hbm_to_vmem [thread:$0]  %s15, 1024, %s145, [#allocation15], 128, 128, 8
    $region65: #{tpu_custom_call.1} parent=1 // pred_fallthru
      _
    // Predicated region
    $region66: #{tpu_custom_call.1} parent=1 // pred_check
      _
    $region67: #{tpu_custom_call.1} parent=1 // pred_check_branch
      %152 = sbr.rel (0) target = $region69
    $region68: #{tpu_custom_call.1} parent=1 // pred_region
      _
    $region69: #{tpu_custom_call.1} parent=1 // pred_fallthru
      _
    // Predicated region
    $region70: #{tpu_custom_call.1} parent=1 // pred_check
      _
    $region71: #{tpu_custom_call.1} parent=1 // pred_check_branch
      %154 = sbr.rel (0) target = $region73
    $region72: #{tpu_custom_call.1} parent=1 // pred_region
      %s156 = ssub.s32 1024, 1024
      %157 = vsyncadd [#allocation18], %s156
      %s158 = sshll.u32 [#allocation17], 4
      %s159 = int_to_ptr.vmem [resolvable:$true] %s158
      %164 = dma.hbm_to_vmem [thread:$0]  %s17, 1024, %s159, [#allocation18], 128, 128, 8
    $region73: #{tpu_custom_call.1} parent=1 // pred_fallthru
      _
    // Predicated region
    $region74: #{tpu_custom_call.1} parent=1 // pred_check
      _
    $region75: #{tpu_custom_call.1} parent=1 // pred_check_branch
      %166 = sbr.rel (0) target = $region77
    $region76: #{tpu_custom_call.1} parent=1 // pred_region
      _
    $region77: #{tpu_custom_call.1} parent=1 // pred_fallthru
      _
    // Predicated region
    $region78: #{tpu_custom_call.1} parent=1 // pred_check
      _
    $region79: #{tpu_custom_call.1} parent=1 // pred_check_branch
      %168 = sbr.rel (0) target = $region81
    $region80: #{tpu_custom_call.1} parent=1 // pred_region
      %169 = dma.done [#allocation3], 128
    $region81: #{tpu_custom_call.1} parent=1 // pred_fallthru
      _
    // Predicated region
    $region82: #{tpu_custom_call.1} parent=1 // pred_check
      _
    $region83: #{tpu_custom_call.1} parent=1 // pred_check_branch
      %171 = sbr.rel (0) target = $region85
    $region84: #{tpu_custom_call.1} parent=1 // pred_region
      %172 = dma.done [#allocation6], 1024
    $region85: #{tpu_custom_call.1} parent=1 // pred_fallthru
      _
    // Predicated region
    $region86: #{tpu_custom_call.1} parent=1 // pred_check
      _
    $region87: #{tpu_custom_call.1} parent=1 // pred_check_branch
      %174 = sbr.rel (0) target = $region89
    $region88: #{tpu_custom_call.1} parent=1 // pred_region
      %175 = dma.done [#allocation6], 32
    $region89: #{tpu_custom_call.1} parent=1 // pred_fallthru
      _
    // Predicated region
    $region90: #{tpu_custom_call.1} parent=1 // pred_check
      _
    $region91: #{tpu_custom_call.1} parent=1 // pred_check_branch
      %177 = sbr.rel (0) target = $region93
    $region92: #{tpu_custom_call.1} parent=1 // pred_region
      %178 = dma.done [#allocation9], 32
    $region93: #{tpu_custom_call.1} parent=1 // pred_fallthru
      _
    // Predicated region
    $region94: #{tpu_custom_call.1} parent=1 // pred_check
      _
    $region95: #{tpu_custom_call.1} parent=1 // pred_check_branch
      %180 = sbr.rel (0) target = $region97
    $region96: #{tpu_custom_call.1} parent=1 // pred_region
      %181 = dma.done [#allocation9], 1024
    $region97: #{tpu_custom_call.1} parent=1 // pred_fallthru
      _
    // Predicated region
    $region98: #{tpu_custom_call.1} parent=1 // pred_check
      _
    $region99: #{tpu_custom_call.1} parent=1 // pred_check_branch
      %183 = sbr.rel (0) target = $region101
    $region100: #{tpu_custom_call.1} parent=1 // pred_region
      %184 = dma.done [#allocation12], 32
    $region101: #{tpu_custom_call.1} parent=1 // pred_fallthru
      _
    // Predicated region
    $region102: #{tpu_custom_call.1} parent=1 // pred_check
      _
    $region103: #{tpu_custom_call.1} parent=1 // pred_check_branch
      %186 = sbr.rel (0) target = $region105
    $region104: #{tpu_custom_call.1} parent=1 // pred_region
      %187 = dma.done [#allocation12], 1024
    $region105: #{tpu_custom_call.1} parent=1 // pred_fallthru
      _
    // Predicated region
    $region106: #{tpu_custom_call.1} parent=1 // pred_check
      _
    $region107: #{tpu_custom_call.1} parent=1 // pred_check_branch
      %189 = sbr.rel (0) target = $region109
    $region108: #{tpu_custom_call.1} parent=1 // pred_region
      %190 = dma.done [#allocation15], 32
    $region109: #{tpu_custom_call.1} parent=1 // pred_fallthru
      _
    // Predicated region
    $region110: #{tpu_custom_call.1} parent=1 // pred_check
      _
    $region111: #{tpu_custom_call.1} parent=1 // pred_check_branch
      %192 = sbr.rel (0) target = $region113
    $region112: #{tpu_custom_call.1} parent=1 // pred_region
      %193 = dma.done [#allocation15], 1024
    $region113: #{tpu_custom_call.1} parent=1 // pred_fallthru
      _
    // Predicated region
    $region114: #{tpu_custom_call.1} parent=1 // pred_check
      _
    $region115: #{tpu_custom_call.1} parent=1 // pred_check_branch
      %195 = sbr.rel (0) target = $region117
    $region116: #{tpu_custom_call.1} parent=1 // pred_region
      %196 = dma.done [#allocation18], 1024
    $region117: #{tpu_custom_call.1} parent=1 // pred_fallthru
      _
    %v197 = vld [vmem:[#allocation2] sm:$0xff]
    %v198 = vld [vmem:[%s1] sm:$0xff]
    %v199 = vld [vmem:[%s2] sm:$0xf]
    %v200 = vld [vmem:[%s2 + $0x4] sm:$0xf]
    %v201 = vunpack.c.l.bf16 %v199
    %v202 = vunpack.c.l.bf16 %v200
    %v203 = vld [vmem:[%s3] sm:$0xf]
    %v204 = vld [vmem:[%s3 + $0x4] sm:$0xf]
    %v205 = vunpack.c.l.bf16 %v203
    %v206 = vunpack.c.l.bf16 %v204
    %v207 = vld [vmem:[%s4] sm:$0xff]
    %v208 = vld [vmem:[%s4 + $0x8] sm:$0xff]
    %v209 = vld [vmem:[%s4 + $0x10] sm:$0xff]
    %v210 = vld [vmem:[%s4 + $0x18] sm:$0xff]
    %vm211 = vcmask 261120
    %v213 = vsel %vm211, %v197, 0
    %215 = vmatprep.subr.mxu0 0.0
    %216 = vmatpush1.msra.mxu0 0.0
    %217 = vmatprep.subr.mxu0 0.0
    %218 = vmatpush1.msra.mxu0 0.0
    %219 = vmatprep.subr.mxu0 0.0
    %220 = vmatpush1.msra.mxu0 0.0
    %221 = vmatprep.subr.mxu0 0.0
    %222 = vmatpush1.msra.mxu0 0.0
    %223 = vmatprep.subr.mxu0 0.0
    %224 = vmatpush1.msra.mxu0 0.0
    %225 = vmatprep.subr.mxu0 0.0
    %226 = vmatpush1.msra.mxu0 0.0
    %227 = vmatprep.subr.mxu0 0.0
    %228 = vmatpush1.msra.mxu0 0.0
    %229 = vmatprep.subr.mxu0 0.0
    %230 = vmatpush1.msra.mxu0 0.0
    %231 = vmatprep.subr.mxu0 0.0
    %232 = vmatpush1.msra.mxu0 0.0
    %233 = vmatprep.subr.mxu0 0.0
    %234 = vmatpush1.msra.mxu0 0.0
    %235 = vmatprep.subr.mxu0 0.0
    %236 = vmatpush1.msra.mxu0 0.0
    %237 = vmatprep.subr.mxu0 0.0
    %238 = vmatpush1.msra.mxu0 0.0
    %239 = vmatprep.subr.mxu0 0.0
    %240 = vmatpush1.msra.mxu0 %v210
    %241 = vmatprep.subr.mxu0 0.0
    %242 = vmatpush1.msra.mxu0 %v209
    %243 = vmatprep.subr.mxu0 0.0
    %244 = vmatpush1.msra.mxu0 %v208
    %245 = vmatprep.subr.mxu0 0.0
    %246 = vmatpush1.msra.mxu0 %v207
    %247 = vmatprep.subr.mxu0 0.0
    %248 = vmatpush2.msra.mxu0 0.0
    %249 = vmatprep.subr.mxu0 0.0
    %250 = vmatpush2.msra.mxu0 0.0
    %251 = vmatprep.subr.mxu0 0.0
    %252 = vmatpush2.msra.mxu0 0.0
    %253 = vmatprep.subr.mxu0 0.0
    %254 = vmatpush2.msra.mxu0 0.0
    %255 = vmatprep.subr.mxu0 0.0
    %256 = vmatpush2.msra.mxu0 0.0
    %257 = vmatprep.subr.mxu0 0.0
    %258 = vmatpush2.msra.mxu0 0.0
    %259 = vmatprep.subr.mxu0 0.0
    %260 = vmatpush2.msra.mxu0 0.0
    %261 = vmatprep.subr.mxu0 0.0
    %262 = vmatpush2.msra.mxu0 0.0
    %263 = vmatprep.subr.mxu0 0.0
    %264 = vmatpush2.msra.mxu0 0.0
    %265 = vmatprep.subr.mxu0 0.0
    %266 = vmatpush2.msra.mxu0 0.0
    %267 = vmatprep.subr.mxu0 0.0
    %268 = vmatpush2.msra.mxu0 0.0
    %269 = vmatprep.subr.mxu0 0.0
    %270 = vmatpush2.msra.mxu0 0.0
    %271 = vmatprep.subr.mxu0 0.0
    %272 = vmatpush2.msra.mxu0 0.0
    %273 = vmatprep.subr.mxu0 0.0
    %274 = vmatpush2.msra.mxu0 0.0
    %275 = vmatprep.subr.mxu0 0.0
    %276 = vmatpush2.msra.mxu0 0.0
    %277 = vmatprep.subr.mxu0 0.0
    %278 = vmatpush2.msra.mxu0 0.0
    %279 = vmatprep.mubr.f32.mxu0 0.0
    %280 = vmatmul.mubr.f32.gmra.mxu0 %v213
    %v281 = vpop.f32.mrf.mxu0
    %v282 = vadd.f32 0.0, %v281
    %v283 = vpop.f32.mrf.mxu0
    %284 = vdwg.mxu0
    %v285 = vld [vmem:[#allocation5] sm:$0xff]
    %v286 = vld [vmem:[#allocation5 + $0x8] sm:$0xff]
    %v287 = vld [vmem:[#allocation5 + $0x10] sm:$0xff]
    %v288 = vld [vmem:[#allocation5 + $0x18] sm:$0xff]
    %289 = vmatprep.subr.mxu0 0.0
    %290 = vmatpush1.msra.mxu0 0.0
    %291 = vmatprep.subr.mxu0 0.0
    %292 = vmatpush1.msra.mxu0 0.0
    %293 = vmatprep.subr.mxu0 0.0
    %294 = vmatpush1.msra.mxu0 0.0
    %295 = vmatprep.subr.mxu0 0.0
    %296 = vmatpush1.msra.mxu0 0.0
    %297 = vmatprep.subr.mxu0 0.0
    %298 = vmatpush1.msra.mxu0 0.0
    %299 = vmatprep.subr.mxu0 0.0
    %300 = vmatpush1.msra.mxu0 0.0
    %301 = vmatprep.subr.mxu0 0.0
    %302 = vmatpush1.msra.mxu0 0.0
    %303 = vmatprep.subr.mxu0 0.0
    %304 = vmatpush1.msra.mxu0 0.0
    %305 = vmatprep.subr.mxu0 0.0
    %306 = vmatpush1.msra.mxu0 0.0
    %307 = vmatprep.subr.mxu0 0.0
    %308 = vmatpush1.msra.mxu0 0.0
    %309 = vmatprep.subr.mxu0 0.0
    %310 = vmatpush1.msra.mxu0 0.0
    %311 = vmatprep.subr.mxu0 0.0
    %312 = vmatpush1.msra.mxu0 0.0
    %313 = vmatprep.subr.mxu0 0.0
    %314 = vmatpush1.msra.mxu0 %v288
    %315 = vmatprep.subr.mxu0 0.0
    %316 = vmatpush1.msra.mxu0 %v287
    %317 = vmatprep.subr.mxu0 0.0
    %318 = vmatpush1.msra.mxu0 %v286
    %319 = vmatprep.subr.mxu0 0.0
    %320 = vmatpush1.msra.mxu0 %v285
    %321 = vmatprep.subr.mxu0 0.0
    %322 = vmatpush2.msra.mxu0 0.0
    %323 = vmatprep.subr.mxu0 0.0
    %324 = vmatpush2.msra.mxu0 0.0
    %325 = vmatprep.subr.mxu0 0.0
    %326 = vmatpush2.msra.mxu0 0.0
    %327 = vmatprep.subr.mxu0 0.0
    %328 = vmatpush2.msra.mxu0 0.0
    %329 = vmatprep.subr.mxu0 0.0
    %330 = vmatpush2.msra.mxu0 0.0
    %331 = vmatprep.subr.mxu0 0.0
    %332 = vmatpush2.msra.mxu0 0.0
    %333 = vmatprep.subr.mxu0 0.0
    %334 = vmatpush2.msra.mxu0 0.0
    %335 = vmatprep.subr.mxu0 0.0
    %336 = vmatpush2.msra.mxu0 0.0
    %337 = vmatprep.subr.mxu0 0.0
    %338 = vmatpush2.msra.mxu0 0.0
    %339 = vmatprep.subr.mxu0 0.0
    %340 = vmatpush2.msra.mxu0 0.0
    %341 = vmatprep.subr.mxu0 0.0
    %342 = vmatpush2.msra.mxu0 0.0
    %343 = vmatprep.subr.mxu0 0.0
    %344 = vmatpush2.msra.mxu0 0.0
    %345 = vmatprep.subr.mxu0 0.0
    %346 = vmatpush2.msra.mxu0 0.0
    %347 = vmatprep.subr.mxu0 0.0
    %348 = vmatpush2.msra.mxu0 0.0
    %349 = vmatprep.subr.mxu0 0.0
    %350 = vmatpush2.msra.mxu0 0.0
    %351 = vmatprep.subr.mxu0 0.0
    %352 = vmatpush2.msra.mxu0 0.0
    %353 = vmatprep.mubr.f32.mxu0 0.0
    %354 = vmatmul.mubr.f32.gmra.mxu0 %v213
    %v355 = vpop.f32.mrf.mxu0
    %v356 = vadd.f32 0.0, %v355
    %v357 = vpop.f32.mrf.mxu0
    %358 = vdwg.mxu0
    %360 = vrot.lane.b32.xlu0 %v198, 32
    %v361 = vpop.permute.xlu0 %360
    %v363 = vsel %vm211, %v356, %v361
    %v364 = vsel %vm211, %v282, %v361
    %vm365 = vcmask 64512
    %v367 = vsel %vm365, %v201, 0
    %v370 = vsel %vm365, %v202, 0
    %372 = vmatprep.subr.mxu0 0.0
    %373 = vmatpush1.msra.mxu0 0.0
    %374 = vmatprep.subr.mxu0 0.0
    %375 = vmatpush1.msra.mxu0 0.0
    %376 = vmatprep.subr.mxu0 0.0
    %377 = vmatpush1.msra.mxu0 0.0
    %378 = vmatprep.subr.mxu0 0.0
    %379 = vmatpush1.msra.mxu0 0.0
    %380 = vmatprep.subr.mxu0 0.0
    %381 = vmatpush1.msra.mxu0 0.0
    %382 = vmatprep.subr.mxu0 0.0
    %383 = vmatpush1.msra.mxu0 0.0
    %384 = vmatprep.subr.mxu0 0.0
    %385 = vmatpush1.msra.mxu0 0.0
    %386 = vmatprep.subr.mxu0 0.0
    %387 = vmatpush1.msra.mxu0 0.0
    %388 = vmatprep.subr.mxu0 0.0
    %389 = vmatpush1.msra.mxu0 0.0
    %390 = vmatprep.subr.mxu0 0.0
    %391 = vmatpush1.msra.mxu0 0.0
    %392 = vmatprep.subr.mxu0 0.0
    %393 = vmatpush1.msra.mxu0 0.0
    %394 = vmatprep.subr.mxu0 0.0
    %395 = vmatpush1.msra.mxu0 0.0
    %396 = vmatprep.subr.mxu0 0.0
    %397 = vmatpush1.msra.mxu0 0.0
    %398 = vmatprep.subr.mxu0 0.0
    %399 = vmatpush1.msra.mxu0 0.0
    %400 = vmatprep.subr.mxu0 0.0
    %401 = vmatpush1.msra.mxu0 0.0
    %402 = vmatprep.subr.mxu0 0.0
    %403 = vmatpush1.msra.mxu0 %v363
    %404 = vmatprep.subr.mxu0 0.0
    %405 = vmatpush2.msra.mxu0 0.0
    %406 = vmatprep.subr.mxu0 0.0
    %407 = vmatpush2.msra.mxu0 0.0
    %408 = vmatprep.subr.mxu0 0.0
    %409 = vmatpush2.msra.mxu0 0.0
    %410 = vmatprep.subr.mxu0 0.0
    %411 = vmatpush2.msra.mxu0 0.0
    %412 = vmatprep.subr.mxu0 0.0
    %413 = vmatpush2.msra.mxu0 0.0
    %414 = vmatprep.subr.mxu0 0.0
    %415 = vmatpush2.msra.mxu0 0.0
    %416 = vmatprep.subr.mxu0 0.0
    %417 = vmatpush2.msra.mxu0 0.0
    %418 = vmatprep.subr.mxu0 0.0
    %419 = vmatpush2.msra.mxu0 0.0
    %420 = vmatprep.subr.mxu0 0.0
    %421 = vmatpush2.msra.mxu0 0.0
    %422 = vmatprep.subr.mxu0 0.0
    %423 = vmatpush2.msra.mxu0 0.0
    %424 = vmatprep.subr.mxu0 0.0
    %425 = vmatpush2.msra.mxu0 0.0
    %426 = vmatprep.subr.mxu0 0.0
    %427 = vmatpush2.msra.mxu0 0.0
    %428 = vmatprep.subr.mxu0 0.0
    %429 = vmatpush2.msra.mxu0 0.0
    %430 = vmatprep.subr.mxu0 0.0
    %431 = vmatpush2.msra.mxu0 0.0
    %432 = vmatprep.subr.mxu0 0.0
    %433 = vmatpush2.msra.mxu0 0.0
    %434 = vmatprep.subr.mxu0 0.0
    %435 = vmatpush2.msra.mxu0 0.0
    %436 = vmatprep.mubr.f32.mxu0 0.0
    %437 = vmatmul.mubr.f32.gmra.mxu0 %v367
    %v438 = vpop.f32.mrf.mxu0
    %v439 = vadd.f32 0.0, %v438
    %v440 = vpop.f32.mrf.mxu0
    %441 = vmatprep.mubr.f32.mxu0 0.0
    %442 = vmatmul.mubr.f32.gmra.mxu0 %v370
    %v443 = vpop.f32.mrf.mxu0
    %v444 = vadd.f32 0.0, %v443
    %v445 = vpop.f32.mrf.mxu0
    %446 = vdwg.mxu0
    %v448 = vsel %vm365, %v205, 0
    %v451 = vsel %vm365, %v206, 0
    %453 = vmatprep.subr.mxu0 0.0
    %454 = vmatpush1.msra.mxu0 0.0
    %455 = vmatprep.subr.mxu0 0.0
    %456 = vmatpush1.msra.mxu0 0.0
    %457 = vmatprep.subr.mxu0 0.0
    %458 = vmatpush1.msra.mxu0 0.0
    %459 = vmatprep.subr.mxu0 0.0
    %460 = vmatpush1.msra.mxu0 0.0
    %461 = vmatprep.subr.mxu0 0.0
    %462 = vmatpush1.msra.mxu0 0.0
    %463 = vmatprep.subr.mxu0 0.0
    %464 = vmatpush1.msra.mxu0 0.0
    %465 = vmatprep.subr.mxu0 0.0
    %466 = vmatpush1.msra.mxu0 0.0
    %467 = vmatprep.subr.mxu0 0.0
    %468 = vmatpush1.msra.mxu0 0.0
    %469 = vmatprep.subr.mxu0 0.0
    %470 = vmatpush1.msra.mxu0 0.0
    %471 = vmatprep.subr.mxu0 0.0
    %472 = vmatpush1.msra.mxu0 0.0
    %473 = vmatprep.subr.mxu0 0.0
    %474 = vmatpush1.msra.mxu0 0.0
    %475 = vmatprep.subr.mxu0 0.0
    %476 = vmatpush1.msra.mxu0 0.0
    %477 = vmatprep.subr.mxu0 0.0
    %478 = vmatpush1.msra.mxu0 0.0
    %479 = vmatprep.subr.mxu0 0.0
    %480 = vmatpush1.msra.mxu0 0.0
    %481 = vmatprep.subr.mxu0 0.0
    %482 = vmatpush1.msra.mxu0 0.0
    %483 = vmatprep.subr.mxu0 0.0
    %484 = vmatpush1.msra.mxu0 %v364
    %485 = vmatprep.subr.mxu0 0.0
    %486 = vmatpush2.msra.mxu0 0.0
    %487 = vmatprep.subr.mxu0 0.0
    %488 = vmatpush2.msra.mxu0 0.0
    %489 = vmatprep.subr.mxu0 0.0
    %490 = vmatpush2.msra.mxu0 0.0
    %491 = vmatprep.subr.mxu0 0.0
    %492 = vmatpush2.msra.mxu0 0.0
    %493 = vmatprep.subr.mxu0 0.0
    %494 = vmatpush2.msra.mxu0 0.0
    %495 = vmatprep.subr.mxu0 0.0
    %496 = vmatpush2.msra.mxu0 0.0
    %497 = vmatprep.subr.mxu0 0.0
    %498 = vmatpush2.msra.mxu0 0.0
    %499 = vmatprep.subr.mxu0 0.0
    %500 = vmatpush2.msra.mxu0 0.0
    %501 = vmatprep.subr.mxu0 0.0
    %502 = vmatpush2.msra.mxu0 0.0
    %503 = vmatprep.subr.mxu0 0.0
    %504 = vmatpush2.msra.mxu0 0.0
    %505 = vmatprep.subr.mxu0 0.0
    %506 = vmatpush2.msra.mxu0 0.0
    %507 = vmatprep.subr.mxu0 0.0
    %508 = vmatpush2.msra.mxu0 0.0
    %509 = vmatprep.subr.mxu0 0.0
    %510 = vmatpush2.msra.mxu0 0.0
    %511 = vmatprep.subr.mxu0 0.0
    %512 = vmatpush2.msra.mxu0 0.0
    %513 = vmatprep.subr.mxu0 0.0
    %514 = vmatpush2.msra.mxu0 0.0
    %515 = vmatprep.subr.mxu0 0.0
    %516 = vmatpush2.msra.mxu0 0.0
    %517 = vmatprep.mubr.f32.mxu0 0.0
    %518 = vmatmul.mubr.f32.gmra.mxu0 %v448
    %v519 = vpop.f32.mrf.mxu0
    %v520 = vadd.f32 0.0, %v519
    %v521 = vpop.f32.mrf.mxu0
    %522 = vmatprep.mubr.f32.mxu0 0.0
    %523 = vmatmul.mubr.f32.gmra.mxu0 %v451
    %v524 = vpop.f32.mrf.mxu0
    %v525 = vadd.f32 0.0, %v524
    %v526 = vpop.f32.mrf.mxu0
    %527 = vdwg.mxu0
    %v528 = vsub.f32 %v439, %v520
    %v529 = vsub.f32 %v444, %v525
    %v530 = vmul.f32 %v528, %v528
    %v531 = vmul.f32 %v529, %v529
    %534 = vrot.lane.b32.xlu0 %v530, 96
    %v535 = vpop.permute.xlu0 %534
    %536 = vrot.lane.b32.xlu0 %v531, 96
    %v537 = vpop.permute.xlu0 %536
    %vm540 = vcmask 23552
    %v541 = vsel %vm540, %v535, 0.0
    %542 = vadd.xlane.f32.xlu0 %v541
    %v543 = vpop.xlane.xlu0 %542
    %v544 = vsel %vm540, %v537, 0.0
    %545 = vadd.xlane.f32.xlu0 %v544
    %v546 = vpop.xlane.xlu0 %545
    %v547 = vrsqrt.pop %v543
    %v548 = vmul.f32 %v543, %v547
    %vm549 = vcmp.eq.f32.partialorder %v543, inf
    %v550 = vsel %vm549, %v543, %v548
    %vm551 = vcmp.eq.f32.partialorder %v543, 0.0
    %v552 = vand.u32 %v543, 2147483648
    %v553 = vsel %vm551, %v552, %v550
    %v554 = vrsqrt.pop %v546
    %v555 = vmul.f32 %v546, %v554
    %vm556 = vcmp.eq.f32.partialorder %v546, inf
    %v557 = vsel %vm556, %v546, %v555
    %vm558 = vcmp.eq.f32.partialorder %v546, 0.0
    %v559 = vand.u32 %v546, 2147483648
    %v560 = vsel %vm558, %v559, %v557
    %v561 = vadd.f32 %v520, %v439
    %v562 = vadd.f32 %v525, %v444
    %v563 = vld [vmem:[#allocation7] sm:$0x1]
    %v565 = vlaneseq
    %v566 = vshrl.u32 %v565, 7
    %v567 = vsub.s32 0, %v566
    %v568 = vrot.slane %v563, %v567
    %v570 = vmul.f32 %v553, %v568
    %v571 = vmul.f32 %v560, %v568
    %v572 = vadd.f32 %v561, %v570
    %v573 = vadd.f32 %v562, %v571
    %v574 = vld [vmem:[#allocation8] sm:$0x1]
    %v576 = vlaneseq
    %v577 = vshrl.u32 %v576, 7
    %v578 = vsub.s32 0, %v577
    %v579 = vrot.slane %v574, %v578
    %v581 = vadd.f32 %v572, %v579
    %v582 = vadd.f32 %v573, %v579
    %v583 = vsub.f32 0.0, %v581
    %v584 = vsub.f32 0.0, %v582
    %v585 = vmul.f32 %v583, 1.442695
    %v586 = vpow.pop %v585
    %v587 = vmul.f32 %v584, 1.442695
    %v588 = vpow.pop %v587
    %v589 = vadd.f32 %v586, 1.0
    %v590 = vadd.f32 %v588, 1.0
    %v591 = vrcp.pop %v589
    %v592 = vrcp.pop %v590
    %v593 = vmul.f32 %v581, %v591
    %v594 = vmul.f32 %v582, %v592
    %v595 = vld [vmem:[#allocation10] sm:$0xff]
    %v596 = vld [vmem:[#allocation10 + $0x8] sm:$0xff]
    %v597 = vld [vmem:[#allocation10 + $0x10] sm:$0xff]
    %v598 = vld [vmem:[#allocation10 + $0x18] sm:$0xff]
    %v599 = vld [vmem:[#allocation11] sm:$0x1]
    %v601 = vlaneseq
    %v602 = vshrl.u32 %v601, 7
    %v603 = vsub.s32 0, %v602
    %v604 = vrot.slane %v599, %v603
    %v607 = vsel %vm211, %v593, 0
    %v610 = vsel %vm211, %v594, 0
    %612 = vmatprep.subr.mxu0 0.0
    %613 = vmatpush1.msra.mxu0 0.0
    %614 = vmatprep.subr.mxu0 0.0
    %615 = vmatpush1.msra.mxu0 0.0
    %616 = vmatprep.subr.mxu0 0.0
    %617 = vmatpush1.msra.mxu0 0.0
    %618 = vmatprep.subr.mxu0 0.0
    %619 = vmatpush1.msra.mxu0 0.0
    %620 = vmatprep.subr.mxu0 0.0
    %621 = vmatpush1.msra.mxu0 0.0
    %622 = vmatprep.subr.mxu0 0.0
    %623 = vmatpush1.msra.mxu0 0.0
    %624 = vmatprep.subr.mxu0 0.0
    %625 = vmatpush1.msra.mxu0 0.0
    %626 = vmatprep.subr.mxu0 0.0
    %627 = vmatpush1.msra.mxu0 0.0
    %628 = vmatprep.subr.mxu0 0.0
    %629 = vmatpush1.msra.mxu0 0.0
    %630 = vmatprep.subr.mxu0 0.0
    %631 = vmatpush1.msra.mxu0 0.0
    %632 = vmatprep.subr.mxu0 0.0
    %633 = vmatpush1.msra.mxu0 0.0
    %634 = vmatprep.subr.mxu0 0.0
    %635 = vmatpush1.msra.mxu0 0.0
    %636 = vmatprep.subr.mxu0 0.0
    %637 = vmatpush1.msra.mxu0 %v598
    %638 = vmatprep.subr.mxu0 0.0
    %639 = vmatpush1.msra.mxu0 %v597
    %640 = vmatprep.subr.mxu0 0.0
    %641 = vmatpush1.msra.mxu0 %v596
    %642 = vmatprep.subr.mxu0 0.0
    %643 = vmatpush1.msra.mxu0 %v595
    %644 = vmatprep.subr.mxu0 0.0
    %645 = vmatpush2.msra.mxu0 0.0
    %646 = vmatprep.subr.mxu0 0.0
    %647 = vmatpush2.msra.mxu0 0.0
    %648 = vmatprep.subr.mxu0 0.0
    %649 = vmatpush2.msra.mxu0 0.0
    %650 = vmatprep.subr.mxu0 0.0
    %651 = vmatpush2.msra.mxu0 0.0
    %652 = vmatprep.subr.mxu0 0.0
    %653 = vmatpush2.msra.mxu0 0.0
    %654 = vmatprep.subr.mxu0 0.0
    %655 = vmatpush2.msra.mxu0 0.0
    %656 = vmatprep.subr.mxu0 0.0
    %657 = vmatpush2.msra.mxu0 0.0
    %658 = vmatprep.subr.mxu0 0.0
    %659 = vmatpush2.msra.mxu0 0.0
    %660 = vmatprep.subr.mxu0 0.0
    %661 = vmatpush2.msra.mxu0 0.0
    %662 = vmatprep.subr.mxu0 0.0
    %663 = vmatpush2.msra.mxu0 0.0
    %664 = vmatprep.subr.mxu0 0.0
    %665 = vmatpush2.msra.mxu0 0.0
    %666 = vmatprep.subr.mxu0 0.0
    %667 = vmatpush2.msra.mxu0 0.0
    %668 = vmatprep.subr.mxu0 0.0
    %669 = vmatpush2.msra.mxu0 0.0
    %670 = vmatprep.subr.mxu0 0.0
    %671 = vmatpush2.msra.mxu0 0.0
    %672 = vmatprep.subr.mxu0 0.0
    %673 = vmatpush2.msra.mxu0 0.0
    %674 = vmatprep.subr.mxu0 0.0
    %675 = vmatpush2.msra.mxu0 0.0
    %676 = vmatprep.mubr.f32.mxu0 0.0
    %677 = vmatmul.mubr.f32.gmra.mxu0 %v607
    %v678 = vpop.f32.mrf.mxu0
    %v679 = vadd.f32 %v604, %v678
    %v680 = vpop.f32.mrf.mxu0
    %681 = vmatprep.mubr.f32.mxu0 0.0
    %682 = vmatmul.mubr.f32.gmra.mxu0 %v610
    %v683 = vpop.f32.mrf.mxu0
    %v684 = vadd.f32 %v604, %v683
    %v685 = vpop.f32.mrf.mxu0
    %686 = vdwg.mxu0
    %v687 = vsub.f32 0.0, %v679
    %v688 = vsub.f32 0.0, %v684
    %v689 = vmul.f32 %v687, 1.442695
    %v690 = vpow.pop %v689
    %v691 = vmul.f32 %v688, 1.442695
    %v692 = vpow.pop %v691
    %v693 = vadd.f32 %v690, 1.0
    %v694 = vadd.f32 %v692, 1.0
    %v695 = vrcp.pop %v693
    %v696 = vrcp.pop %v694
    %v697 = vmul.f32 %v679, %v695
    %v698 = vmul.f32 %v684, %v696
    %v699 = vld [vmem:[#allocation13] sm:$0xff]
    %v700 = vld [vmem:[#allocation13 + $0x8] sm:$0xff]
    %v701 = vld [vmem:[#allocation13 + $0x10] sm:$0xff]
    %v702 = vld [vmem:[#allocation13 + $0x18] sm:$0xff]
    %v703 = vld [vmem:[#allocation14] sm:$0x1]
    %v705 = vlaneseq
    %v706 = vshrl.u32 %v705, 7
    %v707 = vsub.s32 0, %v706
    %v708 = vrot.slane %v703, %v707
    %v711 = vsel %vm211, %v697, 0
    %v714 = vsel %vm211, %v698, 0
    %716 = vmatprep.subr.mxu0 0.0
    %717 = vmatpush1.msra.mxu0 0.0
    %718 = vmatprep.subr.mxu0 0.0
    %719 = vmatpush1.msra.mxu0 0.0
    %720 = vmatprep.subr.mxu0 0.0
    %721 = vmatpush1.msra.mxu0 0.0
    %722 = vmatprep.subr.mxu0 0.0
    %723 = vmatpush1.msra.mxu0 0.0
    %724 = vmatprep.subr.mxu0 0.0
    %725 = vmatpush1.msra.mxu0 0.0
    %726 = vmatprep.subr.mxu0 0.0
    %727 = vmatpush1.msra.mxu0 0.0
    %728 = vmatprep.subr.mxu0 0.0
    %729 = vmatpush1.msra.mxu0 0.0
    %730 = vmatprep.subr.mxu0 0.0
    %731 = vmatpush1.msra.mxu0 0.0
    %732 = vmatprep.subr.mxu0 0.0
    %733 = vmatpush1.msra.mxu0 0.0
    %734 = vmatprep.subr.mxu0 0.0
    %735 = vmatpush1.msra.mxu0 0.0
    %736 = vmatprep.subr.mxu0 0.0
    %737 = vmatpush1.msra.mxu0 0.0
    %738 = vmatprep.subr.mxu0 0.0
    %739 = vmatpush1.msra.mxu0 0.0
    %740 = vmatprep.subr.mxu0 0.0
    %741 = vmatpush1.msra.mxu0 %v702
    %742 = vmatprep.subr.mxu0 0.0
    %743 = vmatpush1.msra.mxu0 %v701
    %744 = vmatprep.subr.mxu0 0.0
    %745 = vmatpush1.msra.mxu0 %v700
    %746 = vmatprep.subr.mxu0 0.0
    %747 = vmatpush1.msra.mxu0 %v699
    %748 = vmatprep.subr.mxu0 0.0
    %749 = vmatpush2.msra.mxu0 0.0
    %750 = vmatprep.subr.mxu0 0.0
    %751 = vmatpush2.msra.mxu0 0.0
    %752 = vmatprep.subr.mxu0 0.0
    %753 = vmatpush2.msra.mxu0 0.0
    %754 = vmatprep.subr.mxu0 0.0
    %755 = vmatpush2.msra.mxu0 0.0
    %756 = vmatprep.subr.mxu0 0.0
    %757 = vmatpush2.msra.mxu0 0.0
    %758 = vmatprep.subr.mxu0 0.0
    %759 = vmatpush2.msra.mxu0 0.0
    %760 = vmatprep.subr.mxu0 0.0
    %761 = vmatpush2.msra.mxu0 0.0
    %762 = vmatprep.subr.mxu0 0.0
    %763 = vmatpush2.msra.mxu0 0.0
    %764 = vmatprep.subr.mxu0 0.0
    %765 = vmatpush2.msra.mxu0 0.0
    %766 = vmatprep.subr.mxu0 0.0
    %767 = vmatpush2.msra.mxu0 0.0
    %768 = vmatprep.subr.mxu0 0.0
    %769 = vmatpush2.msra.mxu0 0.0
    %770 = vmatprep.subr.mxu0 0.0
    %771 = vmatpush2.msra.mxu0 0.0
    %772 = vmatprep.subr.mxu0 0.0
    %773 = vmatpush2.msra.mxu0 0.0
    %774 = vmatprep.subr.mxu0 0.0
    %775 = vmatpush2.msra.mxu0 0.0
    %776 = vmatprep.subr.mxu0 0.0
    %777 = vmatpush2.msra.mxu0 0.0
    %778 = vmatprep.subr.mxu0 0.0
    %779 = vmatpush2.msra.mxu0 0.0
    %780 = vmatprep.mubr.f32.mxu0 0.0
    %781 = vmatmul.mubr.f32.gmra.mxu0 %v711
    %v782 = vpop.f32.mrf.mxu0
    %v783 = vadd.f32 %v708, %v782
    %v784 = vpop.f32.mrf.mxu0
    %785 = vmatprep.mubr.f32.mxu0 0.0
    %786 = vmatmul.mubr.f32.gmra.mxu0 %v714
    %v787 = vpop.f32.mrf.mxu0
    %v788 = vadd.f32 %v708, %v787
    %v789 = vpop.f32.mrf.mxu0
    %790 = vdwg.mxu0
    %v791 = vsub.f32 0.0, %v783
    %v792 = vsub.f32 0.0, %v788
    %v793 = vmul.f32 %v791, 1.442695
    %v794 = vpow.pop %v793
    %v795 = vmul.f32 %v792, 1.442695
    %v796 = vpow.pop %v795
    %v797 = vadd.f32 %v794, 1.0
    %v798 = vadd.f32 %v796, 1.0
    %v799 = vrcp.pop %v797
    %v800 = vrcp.pop %v798
    %v801 = vmul.f32 %v783, %v799
    %v802 = vmul.f32 %v788, %v800
    %v803 = vld [vmem:[%s12] sm:$0xff]
    %v804 = vld [vmem:[%s12 + $0x8] sm:$0xff]
    %v805 = vld [vmem:[%s12 + $0x10] sm:$0xff]
    %v806 = vld [vmem:[%s12 + $0x18] sm:$0xff]
    %v807 = vld [vmem:[%s13] sm:$0x1]
    %v809 = vlaneseq
    %v810 = vshrl.u32 %v809, 7
    %v811 = vsub.s32 0, %v810
    %v812 = vrot.slane %v807, %v811
    %v815 = vsel %vm211, %v801, 0
    %v818 = vsel %vm211, %v802, 0
    %820 = vmatprep.subr.mxu0 0.0
    %821 = vmatpush1.msra.mxu0 0.0
    %822 = vmatprep.subr.mxu0 0.0
    %823 = vmatpush1.msra.mxu0 0.0
    %824 = vmatprep.subr.mxu0 0.0
    %825 = vmatpush1.msra.mxu0 0.0
    %826 = vmatprep.subr.mxu0 0.0
    %827 = vmatpush1.msra.mxu0 0.0
    %828 = vmatprep.subr.mxu0 0.0
    %829 = vmatpush1.msra.mxu0 0.0
    %830 = vmatprep.subr.mxu0 0.0
    %831 = vmatpush1.msra.mxu0 0.0
    %832 = vmatprep.subr.mxu0 0.0
    %833 = vmatpush1.msra.mxu0 0.0
    %834 = vmatprep.subr.mxu0 0.0
    %835 = vmatpush1.msra.mxu0 0.0
    %836 = vmatprep.subr.mxu0 0.0
    %837 = vmatpush1.msra.mxu0 0.0
    %838 = vmatprep.subr.mxu0 0.0
    %839 = vmatpush1.msra.mxu0 0.0
    %840 = vmatprep.subr.mxu0 0.0
    %841 = vmatpush1.msra.mxu0 0.0
    %842 = vmatprep.subr.mxu0 0.0
    %843 = vmatpush1.msra.mxu0 0.0
    %844 = vmatprep.subr.mxu0 0.0
    %845 = vmatpush1.msra.mxu0 %v806
    %846 = vmatprep.subr.mxu0 0.0
    %847 = vmatpush1.msra.mxu0 %v805
    %848 = vmatprep.subr.mxu0 0.0
    %849 = vmatpush1.msra.mxu0 %v804
    %850 = vmatprep.subr.mxu0 0.0
    %851 = vmatpush1.msra.mxu0 %v803
    %852 = vmatprep.subr.mxu0 0.0
    %853 = vmatpush2.msra.mxu0 0.0
    %854 = vmatprep.subr.mxu0 0.0
    %855 = vmatpush2.msra.mxu0 0.0
    %856 = vmatprep.subr.mxu0 0.0
    %857 = vmatpush2.msra.mxu0 0.0
    %858 = vmatprep.subr.mxu0 0.0
    %859 = vmatpush2.msra.mxu0 0.0
    %860 = vmatprep.subr.mxu0 0.0
    %861 = vmatpush2.msra.mxu0 0.0
    %862 = vmatprep.subr.mxu0 0.0
    %863 = vmatpush2.msra.mxu0 0.0
    %864 = vmatprep.subr.mxu0 0.0
    %865 = vmatpush2.msra.mxu0 0.0
    %866 = vmatprep.subr.mxu0 0.0
    %867 = vmatpush2.msra.mxu0 0.0
    %868 = vmatprep.subr.mxu0 0.0
    %869 = vmatpush2.msra.mxu0 0.0
    %870 = vmatprep.subr.mxu0 0.0
    %871 = vmatpush2.msra.mxu0 0.0
    %872 = vmatprep.subr.mxu0 0.0
    %873 = vmatpush2.msra.mxu0 0.0
    %874 = vmatprep.subr.mxu0 0.0
    %875 = vmatpush2.msra.mxu0 0.0
    %876 = vmatprep.subr.mxu0 0.0
    %877 = vmatpush2.msra.mxu0 0.0
    %878 = vmatprep.subr.mxu0 0.0
    %879 = vmatpush2.msra.mxu0 0.0
    %880 = vmatprep.subr.mxu0 0.0
    %881 = vmatpush2.msra.mxu0 0.0
    %882 = vmatprep.subr.mxu0 0.0
    %883 = vmatpush2.msra.mxu0 0.0
    %884 = vmatprep.mubr.f32.mxu0 0.0
    %885 = vmatmul.mubr.f32.gmra.mxu0 %v815
    %v886 = vpop.f32.mrf.mxu0
    %v887 = vadd.f32 %v812, %v886
    %v888 = vpop.f32.mrf.mxu0
    %889 = vmatprep.mubr.f32.mxu0 0.0
    %890 = vmatmul.mubr.f32.gmra.mxu0 %v818
    %v891 = vpop.f32.mrf.mxu0
    %v892 = vadd.f32 %v812, %v891
    %v893 = vpop.f32.mrf.mxu0
    %894 = vdwg.mxu0
    %896 = vset.pattern.permute.xlu0 0
    %897 = vperm.xlu0 %896, %v887
    %v898 = vpop.permute.xlu0 %897
    %901 = vset.pattern.permute.xlu0 0
    %902 = vperm.xlu0 %901, %v892
    %v903 = vpop.permute.xlu0 %902
    %v905 = vmul.f32 %v898, %v528
    %v906 = vmul.f32 %v903, %v529
    %v907 = vsel %vm211, %v697, %v905
    %v908 = vsel %vm211, %v698, %v906
    %909 = vxpose.xlu0.b32.start [1/16] %v205, 128
    %910 = vxpose.xlu0.b32.cont [2/16] %v206, 128
    %911 = vxpose.xlu0.b32.cont [3/16] 0.0, 128
    %912 = vxpose.xlu0.b32.cont [4/16] 0.0, 128
    %913 = vxpose.xlu0.b32.cont [5/16] 0.0, 128
    %914 = vxpose.xlu0.b32.cont [6/16] 0.0, 128
    %915 = vxpose.xlu0.b32.cont [7/16] 0.0, 128
    %916 = vxpose.xlu0.b32.cont [8/16] 0.0, 128
    %917 = vxpose.xlu0.b32.cont [9/16] 0.0, 128
    %918 = vxpose.xlu0.b32.cont [10/16] 0.0, 128
    %919 = vxpose.xlu0.b32.cont [11/16] 0.0, 128
    %920 = vxpose.xlu0.b32.cont [12/16] 0.0, 128
    %921 = vxpose.xlu0.b32.cont [13/16] 0.0, 128
    %922 = vxpose.xlu0.b32.cont [14/16] 0.0, 128
    %923 = vxpose.xlu0.b32.cont [15/16] 0.0, 128
    %924 = vxpose.xlu0.b32.end [16/16] 0.0, 128
    %v925 = vpop.trf.xlu0
    %v926 = vpop.trf.xlu0
    %v927 = vpop.trf.xlu0
    %v928 = vpop.trf.xlu0
    %v929 = vpop.trf.xlu0
    %v930 = vpop.trf.xlu0
    %v931 = vpop.trf.xlu0
    %v932 = vpop.trf.xlu0
    %v933 = vpop.trf.xlu0
    %v934 = vpop.trf.xlu0
    %v935 = vpop.trf.xlu0
    %v936 = vpop.trf.xlu0
    %v937 = vpop.trf.xlu0
    %v938 = vpop.trf.xlu0
    %v939 = vpop.trf.xlu0
    %v940 = vpop.trf.xlu0
    %vm941 = vcmask 130048
    %v943 = vsel %vm941, %v925, 0
    %945 = vmatprep.subr.mxu0 0.0
    %946 = vmatpush1.msra.mxu0 0.0
    %947 = vmatprep.subr.mxu0 0.0
    %948 = vmatpush1.msra.mxu0 0.0
    %949 = vmatprep.subr.mxu0 0.0
    %950 = vmatpush1.msra.mxu0 0.0
    %951 = vmatprep.subr.mxu0 0.0
    %952 = vmatpush1.msra.mxu0 0.0
    %953 = vmatprep.subr.mxu0 0.0
    %954 = vmatpush1.msra.mxu0 0.0
    %955 = vmatprep.subr.mxu0 0.0
    %956 = vmatpush1.msra.mxu0 0.0
    %957 = vmatprep.subr.mxu0 0.0
    %958 = vmatpush1.msra.mxu0 0.0
    %959 = vmatprep.subr.mxu0 0.0
    %960 = vmatpush1.msra.mxu0 0.0
    %961 = vmatprep.subr.mxu0 0.0
    %962 = vmatpush1.msra.mxu0 0.0
    %963 = vmatprep.subr.mxu0 0.0
    %964 = vmatpush1.msra.mxu0 0.0
    %965 = vmatprep.subr.mxu0 0.0
    %966 = vmatpush1.msra.mxu0 0.0
    %967 = vmatprep.subr.mxu0 0.0
    %968 = vmatpush1.msra.mxu0 0.0
    %969 = vmatprep.subr.mxu0 0.0
    %970 = vmatpush1.msra.mxu0 0.0
    %971 = vmatprep.subr.mxu0 0.0
    %972 = vmatpush1.msra.mxu0 0.0
    %973 = vmatprep.subr.mxu0 0.0
    %974 = vmatpush1.msra.mxu0 %v908
    %975 = vmatprep.subr.mxu0 0.0
    %976 = vmatpush1.msra.mxu0 %v907
    %977 = vmatprep.subr.mxu0 0.0
    %978 = vmatpush2.msra.mxu0 0.0
    %979 = vmatprep.subr.mxu0 0.0
    %980 = vmatpush2.msra.mxu0 0.0
    %981 = vmatprep.subr.mxu0 0.0
    %982 = vmatpush2.msra.mxu0 0.0
    %983 = vmatprep.subr.mxu0 0.0
    %984 = vmatpush2.msra.mxu0 0.0
    %985 = vmatprep.subr.mxu0 0.0
    %986 = vmatpush2.msra.mxu0 0.0
    %987 = vmatprep.subr.mxu0 0.0
    %988 = vmatpush2.msra.mxu0 0.0
    %989 = vmatprep.subr.mxu0 0.0
    %990 = vmatpush2.msra.mxu0 0.0
    %991 = vmatprep.subr.mxu0 0.0
    %992 = vmatpush2.msra.mxu0 0.0
    %993 = vmatprep.subr.mxu0 0.0
    %994 = vmatpush2.msra.mxu0 0.0
    %995 = vmatprep.subr.mxu0 0.0
    %996 = vmatpush2.msra.mxu0 0.0
    %997 = vmatprep.subr.mxu0 0.0
    %998 = vmatpush2.msra.mxu0 0.0
    %999 = vmatprep.subr.mxu0 0.0
    %1000 = vmatpush2.msra.mxu0 0.0
    %1001 = vmatprep.subr.mxu0 0.0
    %1002 = vmatpush2.msra.mxu0 0.0
    %1003 = vmatprep.subr.mxu0 0.0
    %1004 = vmatpush2.msra.mxu0 0.0
    %1005 = vmatprep.subr.mxu0 0.0
    %1006 = vmatpush2.msra.mxu0 0.0
    %1007 = vmatprep.subr.mxu0 0.0
    %1008 = vmatpush2.msra.mxu0 0.0
    %1009 = vmatprep.mubr.f32.mxu0 0.0
    %1010 = vmatmul.mubr.f32.gmra.mxu0 %v943
    %v1011 = vpop.f32.mrf.mxu0
    %v1012 = vadd.f32 0.0, %v1011
    %v1013 = vpop.f32.mrf.mxu0
    %1014 = vdwg.mxu0
    %1016 = vrot.lane.b32.xlu0 %v1012, 96
    %v1017 = vpop.permute.xlu0 %1016
    %v1019 = vadd.f32 %v198, %v1017
    %v1020 = vld [vmem:[%s14] sm:$0xff]
    %v1021 = vld [vmem:[%s14 + $0x8] sm:$0xff]
    %v1022 = vld [vmem:[%s14 + $0x10] sm:$0xff]
    %v1023 = vld [vmem:[%s14 + $0x18] sm:$0xff]
    %v1024 = vld [vmem:[#allocation16] sm:$0xff]
    %v1025 = vld [vmem:[#allocation16 + $0x8] sm:$0xff]
    %v1026 = vld [vmem:[#allocation16 + $0x10] sm:$0xff]
    %v1027 = vld [vmem:[#allocation16 + $0x18] sm:$0xff]
    %v1028 = vsel %vm211, %v1012, 0
    %1030 = vmatprep.subr.mxu0 0.0
    %1031 = vmatpush1.msra.mxu0 0.0
    %1032 = vmatprep.subr.mxu0 0.0
    %1033 = vmatpush1.msra.mxu0 0.0
    %1034 = vmatprep.subr.mxu0 0.0
    %1035 = vmatpush1.msra.mxu0 0.0
    %1036 = vmatprep.subr.mxu0 0.0
    %1037 = vmatpush1.msra.mxu0 0.0
    %1038 = vmatprep.subr.mxu0 0.0
    %1039 = vmatpush1.msra.mxu0 0.0
    %1040 = vmatprep.subr.mxu0 0.0
    %1041 = vmatpush1.msra.mxu0 0.0
    %1042 = vmatprep.subr.mxu0 0.0
    %1043 = vmatpush1.msra.mxu0 0.0
    %1044 = vmatprep.subr.mxu0 0.0
    %1045 = vmatpush1.msra.mxu0 0.0
    %1046 = vmatprep.subr.mxu0 0.0
    %1047 = vmatpush1.msra.mxu0 0.0
    %1048 = vmatprep.subr.mxu0 0.0
    %1049 = vmatpush1.msra.mxu0 0.0
    %1050 = vmatprep.subr.mxu0 0.0
    %1051 = vmatpush1.msra.mxu0 0.0
    %1052 = vmatprep.subr.mxu0 0.0
    %1053 = vmatpush1.msra.mxu0 0.0
    %1054 = vmatprep.subr.mxu0 0.0
    %1055 = vmatpush1.msra.mxu0 %v1027
    %1056 = vmatprep.subr.mxu0 0.0
    %1057 = vmatpush1.msra.mxu0 %v1026
    %1058 = vmatprep.subr.mxu0 0.0
    %1059 = vmatpush1.msra.mxu0 %v1025
    %1060 = vmatprep.subr.mxu0 0.0
    %1061 = vmatpush1.msra.mxu0 %v1024
    %1062 = vmatprep.subr.mxu0 0.0
    %1063 = vmatpush2.msra.mxu0 0.0
    %1064 = vmatprep.subr.mxu0 0.0
    %1065 = vmatpush2.msra.mxu0 0.0
    %1066 = vmatprep.subr.mxu0 0.0
    %1067 = vmatpush2.msra.mxu0 0.0
    %1068 = vmatprep.subr.mxu0 0.0
    %1069 = vmatpush2.msra.mxu0 0.0
    %1070 = vmatprep.subr.mxu0 0.0
    %1071 = vmatpush2.msra.mxu0 0.0
    %1072 = vmatprep.subr.mxu0 0.0
    %1073 = vmatpush2.msra.mxu0 0.0
    %1074 = vmatprep.subr.mxu0 0.0
    %1075 = vmatpush2.msra.mxu0 0.0
    %1076 = vmatprep.subr.mxu0 0.0
    %1077 = vmatpush2.msra.mxu0 0.0
    %1078 = vmatprep.subr.mxu0 0.0
    %1079 = vmatpush2.msra.mxu0 0.0
    %1080 = vmatprep.subr.mxu0 0.0
    %1081 = vmatpush2.msra.mxu0 0.0
    %1082 = vmatprep.subr.mxu0 0.0
    %1083 = vmatpush2.msra.mxu0 0.0
    %1084 = vmatprep.subr.mxu0 0.0
    %1085 = vmatpush2.msra.mxu0 0.0
    %1086 = vmatprep.subr.mxu0 0.0
    %1087 = vmatpush2.msra.mxu0 0.0
    %1088 = vmatprep.subr.mxu0 0.0
    %1089 = vmatpush2.msra.mxu0 0.0
    %1090 = vmatprep.subr.mxu0 0.0
    %1091 = vmatpush2.msra.mxu0 0.0
    %1092 = vmatprep.subr.mxu0 0.0
    %1093 = vmatpush2.msra.mxu0 0.0
    %1094 = vmatprep.mubr.f32.mxu0 0.0
    %1095 = vmatmul.mubr.f32.gmra.mxu0 %v1028
    %v1096 = vpop.f32.mrf.mxu0
    %v1097 = vadd.f32 0.0, %v1096
    %v1098 = vpop.f32.mrf.mxu0
    %1099 = vdwg.mxu0
    %1100 = vmatprep.subr.mxu0 0.0
    %1101 = vmatpush1.msra.mxu0 0.0
    %1102 = vmatprep.subr.mxu0 0.0
    %1103 = vmatpush1.msra.mxu0 0.0
    %1104 = vmatprep.subr.mxu0 0.0
    %1105 = vmatpush1.msra.mxu0 0.0
    %1106 = vmatprep.subr.mxu0 0.0
    %1107 = vmatpush1.msra.mxu0 0.0
    %1108 = vmatprep.subr.mxu0 0.0
    %1109 = vmatpush1.msra.mxu0 0.0
    %1110 = vmatprep.subr.mxu0 0.0
    %1111 = vmatpush1.msra.mxu0 0.0
    %1112 = vmatprep.subr.mxu0 0.0
    %1113 = vmatpush1.msra.mxu0 0.0
    %1114 = vmatprep.subr.mxu0 0.0
    %1115 = vmatpush1.msra.mxu0 0.0
    %1116 = vmatprep.subr.mxu0 0.0
    %1117 = vmatpush1.msra.mxu0 0.0
    %1118 = vmatprep.subr.mxu0 0.0
    %1119 = vmatpush1.msra.mxu0 0.0
    %1120 = vmatprep.subr.mxu0 0.0
    %1121 = vmatpush1.msra.mxu0 0.0
    %1122 = vmatprep.subr.mxu0 0.0
    %1123 = vmatpush1.msra.mxu0 0.0
    %1124 = vmatprep.subr.mxu0 0.0
    %1125 = vmatpush1.msra.mxu0 %v1023
    %1126 = vmatprep.subr.mxu0 0.0
    %1127 = vmatpush1.msra.mxu0 %v1022
    %1128 = vmatprep.subr.mxu0 0.0
    %1129 = vmatpush1.msra.mxu0 %v1021
    %1130 = vmatprep.subr.mxu0 0.0
    %1131 = vmatpush1.msra.mxu0 %v1020
    %1132 = vmatprep.subr.mxu0 0.0
    %1133 = vmatpush2.msra.mxu0 0.0
    %1134 = vmatprep.subr.mxu0 0.0
    %1135 = vmatpush2.msra.mxu0 0.0
    %1136 = vmatprep.subr.mxu0 0.0
    %1137 = vmatpush2.msra.mxu0 0.0
    %1138 = vmatprep.subr.mxu0 0.0
    %1139 = vmatpush2.msra.mxu0 0.0
    %1140 = vmatprep.subr.mxu0 0.0
    %1141 = vmatpush2.msra.mxu0 0.0
    %1142 = vmatprep.subr.mxu0 0.0
    %1143 = vmatpush2.msra.mxu0 0.0
    %1144 = vmatprep.subr.mxu0 0.0
    %1145 = vmatpush2.msra.mxu0 0.0
    %1146 = vmatprep.subr.mxu0 0.0
    %1147 = vmatpush2.msra.mxu0 0.0
    %1148 = vmatprep.subr.mxu0 0.0
    %1149 = vmatpush2.msra.mxu0 0.0
    %1150 = vmatprep.subr.mxu0 0.0
    %1151 = vmatpush2.msra.mxu0 0.0
    %1152 = vmatprep.subr.mxu0 0.0
    %1153 = vmatpush2.msra.mxu0 0.0
    %1154 = vmatprep.subr.mxu0 0.0
    %1155 = vmatpush2.msra.mxu0 0.0
    %1156 = vmatprep.subr.mxu0 0.0
    %1157 = vmatpush2.msra.mxu0 0.0
    %1158 = vmatprep.subr.mxu0 0.0
    %1159 = vmatpush2.msra.mxu0 0.0
    %1160 = vmatprep.subr.mxu0 0.0
    %1161 = vmatpush2.msra.mxu0 0.0
    %1162 = vmatprep.subr.mxu0 0.0
    %1163 = vmatpush2.msra.mxu0 0.0
    %1164 = vmatprep.mubr.f32.mxu0 0.0
    %1165 = vmatmul.mubr.f32.gmra.mxu0 %v213
    %v1166 = vpop.f32.mrf.mxu0
    %v1167 = vadd.f32 %v1097, %v1166
    %v1168 = vpop.f32.mrf.mxu0
    %1169 = vdwg.mxu0
    %v1170 = vld [vmem:[%s16] sm:$0x1]
    %v1172 = vlaneseq
    %v1173 = vshrl.u32 %v1172, 7
    %v1174 = vsub.s32 0, %v1173
    %v1175 = vrot.slane %v1170, %v1174
    %v1177 = vadd.f32 %v1167, %v1175
    %v1178 = vsub.f32 0.0, %v1177
    %v1179 = vmul.f32 %v1178, 1.442695
    %v1180 = vpow.pop %v1179
    %v1181 = vadd.f32 %v1180, 1.0
    %v1182 = vrcp.pop %v1181
    %v1183 = vmul.f32 %v1177, %v1182
    %v1184 = vld [vmem:[#allocation17] sm:$0xff]
    %v1185 = vld [vmem:[#allocation17 + $0x8] sm:$0xff]
    %v1186 = vld [vmem:[#allocation17 + $0x10] sm:$0xff]
    %v1187 = vld [vmem:[#allocation17 + $0x18] sm:$0xff]
    %v1189 = vsel %vm211, %v1183, 0
    %1191 = vmatprep.subr.mxu0 0.0
    %1192 = vmatpush1.msra.mxu0 0.0
    %1193 = vmatprep.subr.mxu0 0.0
    %1194 = vmatpush1.msra.mxu0 0.0
    %1195 = vmatprep.subr.mxu0 0.0
    %1196 = vmatpush1.msra.mxu0 0.0
    %1197 = vmatprep.subr.mxu0 0.0
    %1198 = vmatpush1.msra.mxu0 0.0
    %1199 = vmatprep.subr.mxu0 0.0
    %1200 = vmatpush1.msra.mxu0 0.0
    %1201 = vmatprep.subr.mxu0 0.0
    %1202 = vmatpush1.msra.mxu0 0.0
    %1203 = vmatprep.subr.mxu0 0.0
    %1204 = vmatpush1.msra.mxu0 0.0
    %1205 = vmatprep.subr.mxu0 0.0
    %1206 = vmatpush1.msra.mxu0 0.0
    %1207 = vmatprep.subr.mxu0 0.0
    %1208 = vmatpush1.msra.mxu0 0.0
    %1209 = vmatprep.subr.mxu0 0.0
    %1210 = vmatpush1.msra.mxu0 0.0
    %1211 = vmatprep.subr.mxu0 0.0
    %1212 = vmatpush1.msra.mxu0 0.0
    %1213 = vmatprep.subr.mxu0 0.0
    %1214 = vmatpush1.msra.mxu0 0.0
    %1215 = vmatprep.subr.mxu0 0.0
    %1216 = vmatpush1.msra.mxu0 %v1187
    %1217 = vmatprep.subr.mxu0 0.0
    %1218 = vmatpush1.msra.mxu0 %v1186
    %1219 = vmatprep.subr.mxu0 0.0
    %1220 = vmatpush1.msra.mxu0 %v1185
    %1221 = vmatprep.subr.mxu0 0.0
    %1222 = vmatpush1.msra.mxu0 %v1184
    %1223 = vmatprep.subr.mxu0 0.0
    %1224 = vmatpush2.msra.mxu0 0.0
    %1225 = vmatprep.subr.mxu0 0.0
    %1226 = vmatpush2.msra.mxu0 0.0
    %1227 = vmatprep.subr.mxu0 0.0
    %1228 = vmatpush2.msra.mxu0 0.0
    %1229 = vmatprep.subr.mxu0 0.0
    %1230 = vmatpush2.msra.mxu0 0.0
    %1231 = vmatprep.subr.mxu0 0.0
    %1232 = vmatpush2.msra.mxu0 0.0
    %1233 = vmatprep.subr.mxu0 0.0
    %1234 = vmatpush2.msra.mxu0 0.0
    %1235 = vmatprep.subr.mxu0 0.0
    %1236 = vmatpush2.msra.mxu0 0.0
    %1237 = vmatprep.subr.mxu0 0.0
    %1238 = vmatpush2.msra.mxu0 0.0
    %1239 = vmatprep.subr.mxu0 0.0
    %1240 = vmatpush2.msra.mxu0 0.0
    %1241 = vmatprep.subr.mxu0 0.0
    %1242 = vmatpush2.msra.mxu0 0.0
    %1243 = vmatprep.subr.mxu0 0.0
    %1244 = vmatpush2.msra.mxu0 0.0
    %1245 = vmatprep.subr.mxu0 0.0
    %1246 = vmatpush2.msra.mxu0 0.0
    %1247 = vmatprep.subr.mxu0 0.0
    %1248 = vmatpush2.msra.mxu0 0.0
    %1249 = vmatprep.subr.mxu0 0.0
    %1250 = vmatpush2.msra.mxu0 0.0
    %1251 = vmatprep.subr.mxu0 0.0
    %1252 = vmatpush2.msra.mxu0 0.0
    %1253 = vmatprep.subr.mxu0 0.0
    %1254 = vmatpush2.msra.mxu0 0.0
    %1255 = vmatprep.mubr.f32.mxu0 0.0
    %1256 = vmatmul.mubr.f32.gmra.mxu0 %v1189
    %v1257 = vpop.f32.mrf.mxu0
    %v1258 = vadd.f32 0.0, %v1257
    %v1259 = vpop.f32.mrf.mxu0
    %1260 = vdwg.mxu0
    %v1261 = vadd.f32 %v197, %v1258
    %v1262 = vld [vmem:[%s18] sm:$0x1]
    %v1264 = vlaneseq
    %v1265 = vshrl.u32 %v1264, 7
    %v1266 = vsub.s32 0, %v1265
    %v1267 = vrot.slane %v1262, %v1266
    %v1269 = vadd.f32 %v1261, %v1267
    %s1270 = scalar_lea.vmem %s4, 32
    %v1271 = vld [vmem:[%s1270] sm:$0xff]
    %v1272 = vld [vmem:[%s1270 + $0x8] sm:$0xff]
    %v1273 = vld [vmem:[%s1270 + $0x10] sm:$0xff]
    %v1274 = vld [vmem:[%s1270 + $0x18] sm:$0xff]
    %v1276 = vsel %vm211, %v1269, 0
    %1278 = vmatprep.subr.mxu0 0.0
    %1279 = vmatpush1.msra.mxu0 0.0
    %1280 = vmatprep.subr.mxu0 0.0
    %1281 = vmatpush1.msra.mxu0 0.0
    %1282 = vmatprep.subr.mxu0 0.0
    %1283 = vmatpush1.msra.mxu0 0.0
    %1284 = vmatprep.subr.mxu0 0.0
    %1285 = vmatpush1.msra.mxu0 0.0
    %1286 = vmatprep.subr.mxu0 0.0
    %1287 = vmatpush1.msra.mxu0 0.0
    %1288 = vmatprep.subr.mxu0 0.0
    %1289 = vmatpush1.msra.mxu0 0.0
    %1290 = vmatprep.subr.mxu0 0.0
    %1291 = vmatpush1.msra.mxu0 0.0
    %1292 = vmatprep.subr.mxu0 0.0
    %1293 = vmatpush1.msra.mxu0 0.0
    %1294 = vmatprep.subr.mxu0 0.0
    %1295 = vmatpush1.msra.mxu0 0.0
    %1296 = vmatprep.subr.mxu0 0.0
    %1297 = vmatpush1.msra.mxu0 0.0
    %1298 = vmatprep.subr.mxu0 0.0
    %1299 = vmatpush1.msra.mxu0 0.0
    %1300 = vmatprep.subr.mxu0 0.0
    %1301 = vmatpush1.msra.mxu0 0.0
    %1302 = vmatprep.subr.mxu0 0.0
    %1303 = vmatpush1.msra.mxu0 %v1274
    %1304 = vmatprep.subr.mxu0 0.0
    %1305 = vmatpush1.msra.mxu0 %v1273
    %1306 = vmatprep.subr.mxu0 0.0
    %1307 = vmatpush1.msra.mxu0 %v1272
    %1308 = vmatprep.subr.mxu0 0.0
    %1309 = vmatpush1.msra.mxu0 %v1271
    %1310 = vmatprep.subr.mxu0 0.0
    %1311 = vmatpush2.msra.mxu0 0.0
    %1312 = vmatprep.subr.mxu0 0.0
    %1313 = vmatpush2.msra.mxu0 0.0
    %1314 = vmatprep.subr.mxu0 0.0
    %1315 = vmatpush2.msra.mxu0 0.0
    %1316 = vmatprep.subr.mxu0 0.0
    %1317 = vmatpush2.msra.mxu0 0.0
    %1318 = vmatprep.subr.mxu0 0.0
    %1319 = vmatpush2.msra.mxu0 0.0
    %1320 = vmatprep.subr.mxu0 0.0
    %1321 = vmatpush2.msra.mxu0 0.0
    %1322 = vmatprep.subr.mxu0 0.0
    %1323 = vmatpush2.msra.mxu0 0.0
    %1324 = vmatprep.subr.mxu0 0.0
    %1325 = vmatpush2.msra.mxu0 0.0
    %1326 = vmatprep.subr.mxu0 0.0
    %1327 = vmatpush2.msra.mxu0 0.0
    %1328 = vmatprep.subr.mxu0 0.0
    %1329 = vmatpush2.msra.mxu0 0.0
    %1330 = vmatprep.subr.mxu0 0.0
    %1331 = vmatpush2.msra.mxu0 0.0
    %1332 = vmatprep.subr.mxu0 0.0
    %1333 = vmatpush2.msra.mxu0 0.0
    %1334 = vmatprep.subr.mxu0 0.0
    %1335 = vmatpush2.msra.mxu0 0.0
    %1336 = vmatprep.subr.mxu0 0.0
    %1337 = vmatpush2.msra.mxu0 0.0
    %1338 = vmatprep.subr.mxu0 0.0
    %1339 = vmatpush2.msra.mxu0 0.0
    %1340 = vmatprep.subr.mxu0 0.0
    %1341 = vmatpush2.msra.mxu0 0.0
    %1342 = vmatprep.mubr.f32.mxu0 0.0
    %1343 = vmatmul.mubr.f32.gmra.mxu0 %v1276
    %v1344 = vpop.f32.mrf.mxu0
    %v1345 = vadd.f32 0.0, %v1344
    %v1346 = vpop.f32.mrf.mxu0
    %1347 = vdwg.mxu0
    %s1348 = scalar_lea.vmem [#allocation5], 32
    %v1349 = vld [vmem:[%s1348] sm:$0xff]
    %v1350 = vld [vmem:[%s1348 + $0x8] sm:$0xff]
    %v1351 = vld [vmem:[%s1348 + $0x10] sm:$0xff]
    %v1352 = vld [vmem:[%s1348 + $0x18] sm:$0xff]
    %1353 = vmatprep.subr.mxu0 0.0
    %1354 = vmatpush1.msra.mxu0 0.0
    %1355 = vmatprep.subr.mxu0 0.0
    %1356 = vmatpush1.msra.mxu0 0.0
    %1357 = vmatprep.subr.mxu0 0.0
    %1358 = vmatpush1.msra.mxu0 0.0
    %1359 = vmatprep.subr.mxu0 0.0
    %1360 = vmatpush1.msra.mxu0 0.0
    %1361 = vmatprep.subr.mxu0 0.0
    %1362 = vmatpush1.msra.mxu0 0.0
    %1363 = vmatprep.subr.mxu0 0.0
    %1364 = vmatpush1.msra.mxu0 0.0
    %1365 = vmatprep.subr.mxu0 0.0
    %1366 = vmatpush1.msra.mxu0 0.0
    %1367 = vmatprep.subr.mxu0 0.0
    %1368 = vmatpush1.msra.mxu0 0.0
    %1369 = vmatprep.subr.mxu0 0.0
    %1370 = vmatpush1.msra.mxu0 0.0
    %1371 = vmatprep.subr.mxu0 0.0
    %1372 = vmatpush1.msra.mxu0 0.0
    %1373 = vmatprep.subr.mxu0 0.0
    %1374 = vmatpush1.msra.mxu0 0.0
    %1375 = vmatprep.subr.mxu0 0.0
    %1376 = vmatpush1.msra.mxu0 0.0
    %1377 = vmatprep.subr.mxu0 0.0
    %1378 = vmatpush1.msra.mxu0 %v1352
    %1379 = vmatprep.subr.mxu0 0.0
    %1380 = vmatpush1.msra.mxu0 %v1351
    %1381 = vmatprep.subr.mxu0 0.0
    %1382 = vmatpush1.msra.mxu0 %v1350
    %1383 = vmatprep.subr.mxu0 0.0
    %1384 = vmatpush1.msra.mxu0 %v1349
    %1385 = vmatprep.subr.mxu0 0.0
    %1386 = vmatpush2.msra.mxu0 0.0
    %1387 = vmatprep.subr.mxu0 0.0
    %1388 = vmatpush2.msra.mxu0 0.0
    %1389 = vmatprep.subr.mxu0 0.0
    %1390 = vmatpush2.msra.mxu0 0.0
    %1391 = vmatprep.subr.mxu0 0.0
    %1392 = vmatpush2.msra.mxu0 0.0
    %1393 = vmatprep.subr.mxu0 0.0
    %1394 = vmatpush2.msra.mxu0 0.0
    %1395 = vmatprep.subr.mxu0 0.0
    %1396 = vmatpush2.msra.mxu0 0.0
    %1397 = vmatprep.subr.mxu0 0.0
    %1398 = vmatpush2.msra.mxu0 0.0
    %1399 = vmatprep.subr.mxu0 0.0
    %1400 = vmatpush2.msra.mxu0 0.0
    %1401 = vmatprep.subr.mxu0 0.0
    %1402 = vmatpush2.msra.mxu0 0.0
    %1403 = vmatprep.subr.mxu0 0.0
    %1404 = vmatpush2.msra.mxu0 0.0
    %1405 = vmatprep.subr.mxu0 0.0
    %1406 = vmatpush2.msra.mxu0 0.0
    %1407 = vmatprep.subr.mxu0 0.0
    %1408 = vmatpush2.msra.mxu0 0.0
    %1409 = vmatprep.subr.mxu0 0.0
    %1410 = vmatpush2.msra.mxu0 0.0
    %1411 = vmatprep.subr.mxu0 0.0
    %1412 = vmatpush2.msra.mxu0 0.0
    %1413 = vmatprep.subr.mxu0 0.0
    %1414 = vmatpush2.msra.mxu0 0.0
    %1415 = vmatprep.subr.mxu0 0.0
    %1416 = vmatpush2.msra.mxu0 0.0
    %1417 = vmatprep.mubr.f32.mxu0 0.0
    %1418 = vmatmul.mubr.f32.gmra.mxu0 %v1276
    %v1419 = vpop.f32.mrf.mxu0
    %v1420 = vadd.f32 0.0, %v1419
    %v1421 = vpop.f32.mrf.mxu0
    %1422 = vdwg.mxu0
    %1424 = vrot.lane.b32.xlu0 %v1019, 32
    %v1425 = vpop.permute.xlu0 %1424
    %v1427 = vsel %vm211, %v1420, %v1425
    %v1428 = vsel %vm211, %v1345, %v1425
    %1429 = vmatprep.subr.mxu0 0.0
    %1430 = vmatpush1.msra.mxu0 0.0
    %1431 = vmatprep.subr.mxu0 0.0
    %1432 = vmatpush1.msra.mxu0 0.0
    %1433 = vmatprep.subr.mxu0 0.0
    %1434 = vmatpush1.msra.mxu0 0.0
    %1435 = vmatprep.subr.mxu0 0.0
    %1436 = vmatpush1.msra.mxu0 0.0
    %1437 = vmatprep.subr.mxu0 0.0
    %1438 = vmatpush1.msra.mxu0 0.0
    %1439 = vmatprep.subr.mxu0 0.0
    %1440 = vmatpush1.msra.mxu0 0.0
    %1441 = vmatprep.subr.mxu0 0.0
    %1442 = vmatpush1.msra.mxu0 0.0
    %1443 = vmatprep.subr.mxu0 0.0
    %1444 = vmatpush1.msra.mxu0 0.0
    %1445 = vmatprep.subr.mxu0 0.0
    %1446 = vmatpush1.msra.mxu0 0.0
    %1447 = vmatprep.subr.mxu0 0.0
    %1448 = vmatpush1.msra.mxu0 0.0
    %1449 = vmatprep.subr.mxu0 0.0
    %1450 = vmatpush1.msra.mxu0 0.0
    %1451 = vmatprep.subr.mxu0 0.0
    %1452 = vmatpush1.msra.mxu0 0.0
    %1453 = vmatprep.subr.mxu0 0.0
    %1454 = vmatpush1.msra.mxu0 0.0
    %1455 = vmatprep.subr.mxu0 0.0
    %1456 = vmatpush1.msra.mxu0 0.0
    %1457 = vmatprep.subr.mxu0 0.0
    %1458 = vmatpush1.msra.mxu0 0.0
    %1459 = vmatprep.subr.mxu0 0.0
    %1460 = vmatpush1.msra.mxu0 %v1427
    %1461 = vmatprep.subr.mxu0 0.0
    %1462 = vmatpush2.msra.mxu0 0.0
    %1463 = vmatprep.subr.mxu0 0.0
    %1464 = vmatpush2.msra.mxu0 0.0
    %1465 = vmatprep.subr.mxu0 0.0
    %1466 = vmatpush2.msra.mxu0 0.0
    %1467 = vmatprep.subr.mxu0 0.0
    %1468 = vmatpush2.msra.mxu0 0.0
    %1469 = vmatprep.subr.mxu0 0.0
    %1470 = vmatpush2.msra.mxu0 0.0
    %1471 = vmatprep.subr.mxu0 0.0
    %1472 = vmatpush2.msra.mxu0 0.0
    %1473 = vmatprep.subr.mxu0 0.0
    %1474 = vmatpush2.msra.mxu0 0.0
    %1475 = vmatprep.subr.mxu0 0.0
    %1476 = vmatpush2.msra.mxu0 0.0
    %1477 = vmatprep.subr.mxu0 0.0
    %1478 = vmatpush2.msra.mxu0 0.0
    %1479 = vmatprep.subr.mxu0 0.0
    %1480 = vmatpush2.msra.mxu0 0.0
    %1481 = vmatprep.subr.mxu0 0.0
    %1482 = vmatpush2.msra.mxu0 0.0
    %1483 = vmatprep.subr.mxu0 0.0
    %1484 = vmatpush2.msra.mxu0 0.0
    %1485 = vmatprep.subr.mxu0 0.0
    %1486 = vmatpush2.msra.mxu0 0.0
    %1487 = vmatprep.subr.mxu0 0.0
    %1488 = vmatpush2.msra.mxu0 0.0
    %1489 = vmatprep.subr.mxu0 0.0
    %1490 = vmatpush2.msra.mxu0 0.0
    %1491 = vmatprep.subr.mxu0 0.0
    %1492 = vmatpush2.msra.mxu0 0.0
    %1493 = vmatprep.mubr.f32.mxu0 0.0
    %1494 = vmatmul.mubr.f32.gmra.mxu0 %v367
    %v1495 = vpop.f32.mrf.mxu0
    %v1496 = vadd.f32 0.0, %v1495
    %v1497 = vpop.f32.mrf.mxu0
    %1498 = vmatprep.mubr.f32.mxu0 0.0
    %1499 = vmatmul.mubr.f32.gmra.mxu0 %v370
    %v1500 = vpop.f32.mrf.mxu0
    %v1501 = vadd.f32 0.0, %v1500
    %v1502 = vpop.f32.mrf.mxu0
    %1503 = vdwg.mxu0
    %1504 = vmatprep.subr.mxu0 0.0
    %1505 = vmatpush1.msra.mxu0 0.0
    %1506 = vmatprep.subr.mxu0 0.0
    %1507 = vmatpush1.msra.mxu0 0.0
    %1508 = vmatprep.subr.mxu0 0.0
    %1509 = vmatpush1.msra.mxu0 0.0
    %1510 = vmatprep.subr.mxu0 0.0
    %1511 = vmatpush1.msra.mxu0 0.0
    %1512 = vmatprep.subr.mxu0 0.0
    %1513 = vmatpush1.msra.mxu0 0.0
    %1514 = vmatprep.subr.mxu0 0.0
    %1515 = vmatpush1.msra.mxu0 0.0
    %1516 = vmatprep.subr.mxu0 0.0
    %1517 = vmatpush1.msra.mxu0 0.0
    %1518 = vmatprep.subr.mxu0 0.0
    %1519 = vmatpush1.msra.mxu0 0.0
    %1520 = vmatprep.subr.mxu0 0.0
    %1521 = vmatpush1.msra.mxu0 0.0
    %1522 = vmatprep.subr.mxu0 0.0
    %1523 = vmatpush1.msra.mxu0 0.0
    %1524 = vmatprep.subr.mxu0 0.0
    %1525 = vmatpush1.msra.mxu0 0.0
    %1526 = vmatprep.subr.mxu0 0.0
    %1527 = vmatpush1.msra.mxu0 0.0
    %1528 = vmatprep.subr.mxu0 0.0
    %1529 = vmatpush1.msra.mxu0 0.0
    %1530 = vmatprep.subr.mxu0 0.0
    %1531 = vmatpush1.msra.mxu0 0.0
    %1532 = vmatprep.subr.mxu0 0.0
    %1533 = vmatpush1.msra.mxu0 0.0
    %1534 = vmatprep.subr.mxu0 0.0
    %1535 = vmatpush1.msra.mxu0 %v1428
    %1536 = vmatprep.subr.mxu0 0.0
    %1537 = vmatpush2.msra.mxu0 0.0
    %1538 = vmatprep.subr.mxu0 0.0
    %1539 = vmatpush2.msra.mxu0 0.0
    %1540 = vmatprep.subr.mxu0 0.0
    %1541 = vmatpush2.msra.mxu0 0.0
    %1542 = vmatprep.subr.mxu0 0.0
    %1543 = vmatpush2.msra.mxu0 0.0
    %1544 = vmatprep.subr.mxu0 0.0
    %1545 = vmatpush2.msra.mxu0 0.0
    %1546 = vmatprep.subr.mxu0 0.0
    %1547 = vmatpush2.msra.mxu0 0.0
    %1548 = vmatprep.subr.mxu0 0.0
    %1549 = vmatpush2.msra.mxu0 0.0
    %1550 = vmatprep.subr.mxu0 0.0
    %1551 = vmatpush2.msra.mxu0 0.0
    %1552 = vmatprep.subr.mxu0 0.0
    %1553 = vmatpush2.msra.mxu0 0.0
    %1554 = vmatprep.subr.mxu0 0.0
    %1555 = vmatpush2.msra.mxu0 0.0
    %1556 = vmatprep.subr.mxu0 0.0
    %1557 = vmatpush2.msra.mxu0 0.0
    %1558 = vmatprep.subr.mxu0 0.0
    %1559 = vmatpush2.msra.mxu0 0.0
    %1560 = vmatprep.subr.mxu0 0.0
    %1561 = vmatpush2.msra.mxu0 0.0
    %1562 = vmatprep.subr.mxu0 0.0
    %1563 = vmatpush2.msra.mxu0 0.0
    %1564 = vmatprep.subr.mxu0 0.0
    %1565 = vmatpush2.msra.mxu0 0.0
    %1566 = vmatprep.subr.mxu0 0.0
    %1567 = vmatpush2.msra.mxu0 0.0
    %1568 = vmatprep.mubr.f32.mxu0 0.0
    %1569 = vmatmul.mubr.f32.gmra.mxu0 %v448
    %v1570 = vpop.f32.mrf.mxu0
    %v1571 = vadd.f32 0.0, %v1570
    %v1572 = vpop.f32.mrf.mxu0
    %1573 = vmatprep.mubr.f32.mxu0 0.0
    %1574 = vmatmul.mubr.f32.gmra.mxu0 %v451
    %v1575 = vpop.f32.mrf.mxu0
    %v1576 = vadd.f32 0.0, %v1575
    %v1577 = vpop.f32.mrf.mxu0
    %1578 = vdwg.mxu0
    %v1579 = vsub.f32 %v1496, %v1571
    %v1580 = vsub.f32 %v1501, %v1576
    %v1581 = vmul.f32 %v1579, %v1579
    %v1582 = vmul.f32 %v1580, %v1580
    %1585 = vrot.lane.b32.xlu0 %v1581, 96
    %v1586 = vpop.permute.xlu0 %1585
    %1587 = vrot.lane.b32.xlu0 %v1582, 96
    %v1588 = vpop.permute.xlu0 %1587
    %v1591 = vsel %vm540, %v1586, 0.0
    %1592 = vadd.xlane.f32.xlu0 %v1591
    %v1593 = vpop.xlane.xlu0 %1592
    %v1594 = vsel %vm540, %v1588, 0.0
    %1595 = vadd.xlane.f32.xlu0 %v1594
    %v1596 = vpop.xlane.xlu0 %1595
    %v1597 = vrsqrt.pop %v1593
    %v1598 = vmul.f32 %v1593, %v1597
    %vm1599 = vcmp.eq.f32.partialorder %v1593, inf
    %v1600 = vsel %vm1599, %v1593, %v1598
    %vm1601 = vcmp.eq.f32.partialorder %v1593, 0.0
    %v1602 = vand.u32 %v1593, 2147483648
    %v1603 = vsel %vm1601, %v1602, %v1600
    %v1604 = vrsqrt.pop %v1596
    %v1605 = vmul.f32 %v1596, %v1604
    %vm1606 = vcmp.eq.f32.partialorder %v1596, inf
    %v1607 = vsel %vm1606, %v1596, %v1605
    %vm1608 = vcmp.eq.f32.partialorder %v1596, 0.0
    %v1609 = vand.u32 %v1596, 2147483648
    %v1610 = vsel %vm1608, %v1609, %v1607
    %v1611 = vadd.f32 %v1571, %v1496
    %v1612 = vadd.f32 %v1576, %v1501
    %s1613 = scalar_lea.vmem [#allocation7], 1
    %v1614 = vld [vmem:[%s1613] sm:$0x1]
    %v1616 = vlaneseq
    %v1617 = vshrl.u32 %v1616, 7
    %v1618 = vsub.s32 0, %v1617
    %v1619 = vrot.slane %v1614, %v1618
    %v1621 = vmul.f32 %v1603, %v1619
    %v1622 = vmul.f32 %v1610, %v1619
    %v1623 = vadd.f32 %v1611, %v1621
    %v1624 = vadd.f32 %v1612, %v1622
    %s1625 = scalar_lea.vmem [#allocation8], 1
    %v1626 = vld [vmem:[%s1625] sm:$0x1]
    %v1628 = vlaneseq
    %v1629 = vshrl.u32 %v1628, 7
    %v1630 = vsub.s32 0, %v1629
    %v1631 = vrot.slane %v1626, %v1630
    %v1633 = vadd.f32 %v1623, %v1631
    %v1634 = vadd.f32 %v1624, %v1631
    %v1635 = vsub.f32 0.0, %v1633
    %v1636 = vsub.f32 0.0, %v1634
    %v1637 = vmul.f32 %v1635, 1.442695
    %v1638 = vpow.pop %v1637
    %v1639 = vmul.f32 %v1636, 1.442695
    %v1640 = vpow.pop %v1639
    %v1641 = vadd.f32 %v1638, 1.0
    %v1642 = vadd.f32 %v1640, 1.0
    %v1643 = vrcp.pop %v1641
    %v1644 = vrcp.pop %v1642
    %v1645 = vmul.f32 %v1633, %v1643
    %v1646 = vmul.f32 %v1634, %v1644
    %s1647 = scalar_lea.vmem [#allocation10], 32
    %v1648 = vld [vmem:[%s1647] sm:$0xff]
    %v1649 = vld [vmem:[%s1647 + $0x8] sm:$0xff]
    %v1650 = vld [vmem:[%s1647 + $0x10] sm:$0xff]
    %v1651 = vld [vmem:[%s1647 + $0x18] sm:$0xff]
    %s1652 = scalar_lea.vmem [#allocation11], 1
    %v1653 = vld [vmem:[%s1652] sm:$0x1]
    %v1655 = vlaneseq
    %v1656 = vshrl.u32 %v1655, 7
    %v1657 = vsub.s32 0, %v1656
    %v1658 = vrot.slane %v1653, %v1657
    %v1661 = vsel %vm211, %v1645, 0
    %v1664 = vsel %vm211, %v1646, 0
    %1666 = vmatprep.subr.mxu0 0.0
    %1667 = vmatpush1.msra.mxu0 0.0
    %1668 = vmatprep.subr.mxu0 0.0
    %1669 = vmatpush1.msra.mxu0 0.0
    %1670 = vmatprep.subr.mxu0 0.0
    %1671 = vmatpush1.msra.mxu0 0.0
    %1672 = vmatprep.subr.mxu0 0.0
    %1673 = vmatpush1.msra.mxu0 0.0
    %1674 = vmatprep.subr.mxu0 0.0
    %1675 = vmatpush1.msra.mxu0 0.0
    %1676 = vmatprep.subr.mxu0 0.0
    %1677 = vmatpush1.msra.mxu0 0.0
    %1678 = vmatprep.subr.mxu0 0.0
    %1679 = vmatpush1.msra.mxu0 0.0
    %1680 = vmatprep.subr.mxu0 0.0
    %1681 = vmatpush1.msra.mxu0 0.0
    %1682 = vmatprep.subr.mxu0 0.0
    %1683 = vmatpush1.msra.mxu0 0.0
    %1684 = vmatprep.subr.mxu0 0.0
    %1685 = vmatpush1.msra.mxu0 0.0
    %1686 = vmatprep.subr.mxu0 0.0
    %1687 = vmatpush1.msra.mxu0 0.0
    %1688 = vmatprep.subr.mxu0 0.0
    %1689 = vmatpush1.msra.mxu0 0.0
    %1690 = vmatprep.subr.mxu0 0.0
    %1691 = vmatpush1.msra.mxu0 %v1651
    %1692 = vmatprep.subr.mxu0 0.0
    %1693 = vmatpush1.msra.mxu0 %v1650
    %1694 = vmatprep.subr.mxu0 0.0
    %1695 = vmatpush1.msra.mxu0 %v1649
    %1696 = vmatprep.subr.mxu0 0.0
    %1697 = vmatpush1.msra.mxu0 %v1648
    %1698 = vmatprep.subr.mxu0 0.0
    %1699 = vmatpush2.msra.mxu0 0.0
    %1700 = vmatprep.subr.mxu0 0.0
    %1701 = vmatpush2.msra.mxu0 0.0
    %1702 = vmatprep.subr.mxu0 0.0
    %1703 = vmatpush2.msra.mxu0 0.0
    %1704 = vmatprep.subr.mxu0 0.0
    %1705 = vmatpush2.msra.mxu0 0.0
    %1706 = vmatprep.subr.mxu0 0.0
    %1707 = vmatpush2.msra.mxu0 0.0
    %1708 = vmatprep.subr.mxu0 0.0
    %1709 = vmatpush2.msra.mxu0 0.0
    %1710 = vmatprep.subr.mxu0 0.0
    %1711 = vmatpush2.msra.mxu0 0.0
    %1712 = vmatprep.subr.mxu0 0.0
    %1713 = vmatpush2.msra.mxu0 0.0
    %1714 = vmatprep.subr.mxu0 0.0
    %1715 = vmatpush2.msra.mxu0 0.0
    %1716 = vmatprep.subr.mxu0 0.0
    %1717 = vmatpush2.msra.mxu0 0.0
    %1718 = vmatprep.subr.mxu0 0.0
    %1719 = vmatpush2.msra.mxu0 0.0
    %1720 = vmatprep.subr.mxu0 0.0
    %1721 = vmatpush2.msra.mxu0 0.0
    %1722 = vmatprep.subr.mxu0 0.0
    %1723 = vmatpush2.msra.mxu0 0.0
    %1724 = vmatprep.subr.mxu0 0.0
    %1725 = vmatpush2.msra.mxu0 0.0
    %1726 = vmatprep.subr.mxu0 0.0
    %1727 = vmatpush2.msra.mxu0 0.0
    %1728 = vmatprep.subr.mxu0 0.0
    %1729 = vmatpush2.msra.mxu0 0.0
    %1730 = vmatprep.mubr.f32.mxu0 0.0
    %1731 = vmatmul.mubr.f32.gmra.mxu0 %v1661
    %v1732 = vpop.f32.mrf.mxu0
    %v1733 = vadd.f32 %v1658, %v1732
    %v1734 = vpop.f32.mrf.mxu0
    %1735 = vmatprep.mubr.f32.mxu0 0.0
    %1736 = vmatmul.mubr.f32.gmra.mxu0 %v1664
    %v1737 = vpop.f32.mrf.mxu0
    %v1738 = vadd.f32 %v1658, %v1737
    %v1739 = vpop.f32.mrf.mxu0
    %1740 = vdwg.mxu0
    %v1741 = vsub.f32 0.0, %v1733
    %v1742 = vsub.f32 0.0, %v1738
    %v1743 = vmul.f32 %v1741, 1.442695
    %v1744 = vpow.pop %v1743
    %v1745 = vmul.f32 %v1742, 1.442695
    %v1746 = vpow.pop %v1745
    %v1747 = vadd.f32 %v1744, 1.0
    %v1748 = vadd.f32 %v1746, 1.0
    %v1749 = vrcp.pop %v1747
    %v1750 = vrcp.pop %v1748
    %v1751 = vmul.f32 %v1733, %v1749
    %v1752 = vmul.f32 %v1738, %v1750
    %s1753 = scalar_lea.vmem [#allocation13], 32
    %v1754 = vld [vmem:[%s1753] sm:$0xff]
    %v1755 = vld [vmem:[%s1753 + $0x8] sm:$0xff]
    %v1756 = vld [vmem:[%s1753 + $0x10] sm:$0xff]
    %v1757 = vld [vmem:[%s1753 + $0x18] sm:$0xff]
    %s1758 = scalar_lea.vmem [#allocation14], 1
    %v1759 = vld [vmem:[%s1758] sm:$0x1]
    %v1761 = vlaneseq
    %v1762 = vshrl.u32 %v1761, 7
    %v1763 = vsub.s32 0, %v1762
    %v1764 = vrot.slane %v1759, %v1763
    %v1767 = vsel %vm211, %v1751, 0
    %v1770 = vsel %vm211, %v1752, 0
    %1772 = vmatprep.subr.mxu0 0.0
    %1773 = vmatpush1.msra.mxu0 0.0
    %1774 = vmatprep.subr.mxu0 0.0
    %1775 = vmatpush1.msra.mxu0 0.0
    %1776 = vmatprep.subr.mxu0 0.0
    %1777 = vmatpush1.msra.mxu0 0.0
    %1778 = vmatprep.subr.mxu0 0.0
    %1779 = vmatpush1.msra.mxu0 0.0
    %1780 = vmatprep.subr.mxu0 0.0
    %1781 = vmatpush1.msra.mxu0 0.0
    %1782 = vmatprep.subr.mxu0 0.0
    %1783 = vmatpush1.msra.mxu0 0.0
    %1784 = vmatprep.subr.mxu0 0.0
    %1785 = vmatpush1.msra.mxu0 0.0
    %1786 = vmatprep.subr.mxu0 0.0
    %1787 = vmatpush1.msra.mxu0 0.0
    %1788 = vmatprep.subr.mxu0 0.0
    %1789 = vmatpush1.msra.mxu0 0.0
    %1790 = vmatprep.subr.mxu0 0.0
    %1791 = vmatpush1.msra.mxu0 0.0
    %1792 = vmatprep.subr.mxu0 0.0
    %1793 = vmatpush1.msra.mxu0 0.0
    %1794 = vmatprep.subr.mxu0 0.0
    %1795 = vmatpush1.msra.mxu0 0.0
    %1796 = vmatprep.subr.mxu0 0.0
    %1797 = vmatpush1.msra.mxu0 %v1757
    %1798 = vmatprep.subr.mxu0 0.0
    %1799 = vmatpush1.msra.mxu0 %v1756
    %1800 = vmatprep.subr.mxu0 0.0
    %1801 = vmatpush1.msra.mxu0 %v1755
    %1802 = vmatprep.subr.mxu0 0.0
    %1803 = vmatpush1.msra.mxu0 %v1754
    %1804 = vmatprep.subr.mxu0 0.0
    %1805 = vmatpush2.msra.mxu0 0.0
    %1806 = vmatprep.subr.mxu0 0.0
    %1807 = vmatpush2.msra.mxu0 0.0
    %1808 = vmatprep.subr.mxu0 0.0
    %1809 = vmatpush2.msra.mxu0 0.0
    %1810 = vmatprep.subr.mxu0 0.0
    %1811 = vmatpush2.msra.mxu0 0.0
    %1812 = vmatprep.subr.mxu0 0.0
    %1813 = vmatpush2.msra.mxu0 0.0
    %1814 = vmatprep.subr.mxu0 0.0
    %1815 = vmatpush2.msra.mxu0 0.0
    %1816 = vmatprep.subr.mxu0 0.0
    %1817 = vmatpush2.msra.mxu0 0.0
    %1818 = vmatprep.subr.mxu0 0.0
    %1819 = vmatpush2.msra.mxu0 0.0
    %1820 = vmatprep.subr.mxu0 0.0
    %1821 = vmatpush2.msra.mxu0 0.0
    %1822 = vmatprep.subr.mxu0 0.0
    %1823 = vmatpush2.msra.mxu0 0.0
    %1824 = vmatprep.subr.mxu0 0.0
    %1825 = vmatpush2.msra.mxu0 0.0
    %1826 = vmatprep.subr.mxu0 0.0
    %1827 = vmatpush2.msra.mxu0 0.0
    %1828 = vmatprep.subr.mxu0 0.0
    %1829 = vmatpush2.msra.mxu0 0.0
    %1830 = vmatprep.subr.mxu0 0.0
    %1831 = vmatpush2.msra.mxu0 0.0
    %1832 = vmatprep.subr.mxu0 0.0
    %1833 = vmatpush2.msra.mxu0 0.0
    %1834 = vmatprep.subr.mxu0 0.0
    %1835 = vmatpush2.msra.mxu0 0.0
    %1836 = vmatprep.mubr.f32.mxu0 0.0
    %1837 = vmatmul.mubr.f32.gmra.mxu0 %v1767
    %v1838 = vpop.f32.mrf.mxu0
    %v1839 = vadd.f32 %v1764, %v1838
    %v1840 = vpop.f32.mrf.mxu0
    %1841 = vmatprep.mubr.f32.mxu0 0.0
    %1842 = vmatmul.mubr.f32.gmra.mxu0 %v1770
    %v1843 = vpop.f32.mrf.mxu0
    %v1844 = vadd.f32 %v1764, %v1843
    %v1845 = vpop.f32.mrf.mxu0
    %1846 = vdwg.mxu0
    %v1847 = vsub.f32 0.0, %v1839
    %v1848 = vsub.f32 0.0, %v1844
    %v1849 = vmul.f32 %v1847, 1.442695
    %v1850 = vpow.pop %v1849
    %v1851 = vmul.f32 %v1848, 1.442695
    %v1852 = vpow.pop %v1851
    %v1853 = vadd.f32 %v1850, 1.0
    %v1854 = vadd.f32 %v1852, 1.0
    %v1855 = vrcp.pop %v1853
    %v1856 = vrcp.pop %v1854
    %v1857 = vmul.f32 %v1839, %v1855
    %v1858 = vmul.f32 %v1844, %v1856
    %s1859 = scalar_lea.vmem %s12, 32
    %v1860 = vld [vmem:[%s1859] sm:$0xff]
    %v1861 = vld [vmem:[%s1859 + $0x8] sm:$0xff]
    %v1862 = vld [vmem:[%s1859 + $0x10] sm:$0xff]
    %v1863 = vld [vmem:[%s1859 + $0x18] sm:$0xff]
    %s1864 = scalar_lea.vmem %s13, 1
    %v1865 = vld [vmem:[%s1864] sm:$0x1]
    %v1867 = vlaneseq
    %v1868 = vshrl.u32 %v1867, 7
    %v1869 = vsub.s32 0, %v1868
    %v1870 = vrot.slane %v1865, %v1869
    %v1873 = vsel %vm211, %v1857, 0
    %v1876 = vsel %vm211, %v1858, 0
    %1878 = vmatprep.subr.mxu0 0.0
    %1879 = vmatpush1.msra.mxu0 0.0
    %1880 = vmatprep.subr.mxu0 0.0
    %1881 = vmatpush1.msra.mxu0 0.0
    %1882 = vmatprep.subr.mxu0 0.0
    %1883 = vmatpush1.msra.mxu0 0.0
    %1884 = vmatprep.subr.mxu0 0.0
    %1885 = vmatpush1.msra.mxu0 0.0
    %1886 = vmatprep.subr.mxu0 0.0
    %1887 = vmatpush1.msra.mxu0 0.0
    %1888 = vmatprep.subr.mxu0 0.0
    %1889 = vmatpush1.msra.mxu0 0.0
    %1890 = vmatprep.subr.mxu0 0.0
    %1891 = vmatpush1.msra.mxu0 0.0
    %1892 = vmatprep.subr.mxu0 0.0
    %1893 = vmatpush1.msra.mxu0 0.0
    %1894 = vmatprep.subr.mxu0 0.0
    %1895 = vmatpush1.msra.mxu0 0.0
    %1896 = vmatprep.subr.mxu0 0.0
    %1897 = vmatpush1.msra.mxu0 0.0
    %1898 = vmatprep.subr.mxu0 0.0
    %1899 = vmatpush1.msra.mxu0 0.0
    %1900 = vmatprep.subr.mxu0 0.0
    %1901 = vmatpush1.msra.mxu0 0.0
    %1902 = vmatprep.subr.mxu0 0.0
    %1903 = vmatpush1.msra.mxu0 %v1863
    %1904 = vmatprep.subr.mxu0 0.0
    %1905 = vmatpush1.msra.mxu0 %v1862
    %1906 = vmatprep.subr.mxu0 0.0
    %1907 = vmatpush1.msra.mxu0 %v1861
    %1908 = vmatprep.subr.mxu0 0.0
    %1909 = vmatpush1.msra.mxu0 %v1860
    %1910 = vmatprep.subr.mxu0 0.0
    %1911 = vmatpush2.msra.mxu0 0.0
    %1912 = vmatprep.subr.mxu0 0.0
    %1913 = vmatpush2.msra.mxu0 0.0
    %1914 = vmatprep.subr.mxu0 0.0
    %1915 = vmatpush2.msra.mxu0 0.0
    %1916 = vmatprep.subr.mxu0 0.0
    %1917 = vmatpush2.msra.mxu0 0.0
    %1918 = vmatprep.subr.mxu0 0.0
    %1919 = vmatpush2.msra.mxu0 0.0
    %1920 = vmatprep.subr.mxu0 0.0
    %1921 = vmatpush2.msra.mxu0 0.0
    %1922 = vmatprep.subr.mxu0 0.0
    %1923 = vmatpush2.msra.mxu0 0.0
    %1924 = vmatprep.subr.mxu0 0.0
    %1925 = vmatpush2.msra.mxu0 0.0
    %1926 = vmatprep.subr.mxu0 0.0
    %1927 = vmatpush2.msra.mxu0 0.0
    %1928 = vmatprep.subr.mxu0 0.0
    %1929 = vmatpush2.msra.mxu0 0.0
    %1930 = vmatprep.subr.mxu0 0.0
    %1931 = vmatpush2.msra.mxu0 0.0
    %1932 = vmatprep.subr.mxu0 0.0
    %1933 = vmatpush2.msra.mxu0 0.0
    %1934 = vmatprep.subr.mxu0 0.0
    %1935 = vmatpush2.msra.mxu0 0.0
    %1936 = vmatprep.subr.mxu0 0.0
    %1937 = vmatpush2.msra.mxu0 0.0
    %1938 = vmatprep.subr.mxu0 0.0
    %1939 = vmatpush2.msra.mxu0 0.0
    %1940 = vmatprep.subr.mxu0 0.0
    %1941 = vmatpush2.msra.mxu0 0.0
    %1942 = vmatprep.mubr.f32.mxu0 0.0
    %1943 = vmatmul.mubr.f32.gmra.mxu0 %v1873
    %v1944 = vpop.f32.mrf.mxu0
    %v1945 = vadd.f32 %v1870, %v1944
    %v1946 = vpop.f32.mrf.mxu0
    %1947 = vmatprep.mubr.f32.mxu0 0.0
    %1948 = vmatmul.mubr.f32.gmra.mxu0 %v1876
    %v1949 = vpop.f32.mrf.mxu0
    %v1950 = vadd.f32 %v1870, %v1949
    %v1951 = vpop.f32.mrf.mxu0
    %1952 = vdwg.mxu0
    %1954 = vset.pattern.permute.xlu0 0
    %1955 = vperm.xlu0 %1954, %v1945
    %v1956 = vpop.permute.xlu0 %1955
    %1959 = vset.pattern.permute.xlu0 0
    %1960 = vperm.xlu0 %1959, %v1950
    %v1961 = vpop.permute.xlu0 %1960
    %v1963 = vmul.f32 %v1956, %v1579
    %v1964 = vmul.f32 %v1961, %v1580
    %v1965 = vsel %vm211, %v1751, %v1963
    %v1966 = vsel %vm211, %v1752, %v1964
    %1967 = vmatprep.subr.mxu0 0.0
    %1968 = vmatpush1.msra.mxu0 0.0
    %1969 = vmatprep.subr.mxu0 0.0
    %1970 = vmatpush1.msra.mxu0 0.0
    %1971 = vmatprep.subr.mxu0 0.0
    %1972 = vmatpush1.msra.mxu0 0.0
    %1973 = vmatprep.subr.mxu0 0.0
    %1974 = vmatpush1.msra.mxu0 0.0
    %1975 = vmatprep.subr.mxu0 0.0
    %1976 = vmatpush1.msra.mxu0 0.0
    %1977 = vmatprep.subr.mxu0 0.0
    %1978 = vmatpush1.msra.mxu0 0.0
    %1979 = vmatprep.subr.mxu0 0.0
    %1980 = vmatpush1.msra.mxu0 0.0
    %1981 = vmatprep.subr.mxu0 0.0
    %1982 = vmatpush1.msra.mxu0 0.0
    %1983 = vmatprep.subr.mxu0 0.0
    %1984 = vmatpush1.msra.mxu0 0.0
    %1985 = vmatprep.subr.mxu0 0.0
    %1986 = vmatpush1.msra.mxu0 0.0
    %1987 = vmatprep.subr.mxu0 0.0
    %1988 = vmatpush1.msra.mxu0 0.0
    %1989 = vmatprep.subr.mxu0 0.0
    %1990 = vmatpush1.msra.mxu0 0.0
    %1991 = vmatprep.subr.mxu0 0.0
    %1992 = vmatpush1.msra.mxu0 0.0
    %1993 = vmatprep.subr.mxu0 0.0
    %1994 = vmatpush1.msra.mxu0 0.0
    %1995 = vmatprep.subr.mxu0 0.0
    %1996 = vmatpush1.msra.mxu0 %v1966
    %1997 = vmatprep.subr.mxu0 0.0
    %1998 = vmatpush1.msra.mxu0 %v1965
    %1999 = vmatprep.subr.mxu0 0.0
    %2000 = vmatpush2.msra.mxu0 0.0
    %2001 = vmatprep.subr.mxu0 0.0
    %2002 = vmatpush2.msra.mxu0 0.0
    %2003 = vmatprep.subr.mxu0 0.0
    %2004 = vmatpush2.msra.mxu0 0.0
    %2005 = vmatprep.subr.mxu0 0.0
    %2006 = vmatpush2.msra.mxu0 0.0
    %2007 = vmatprep.subr.mxu0 0.0
    %2008 = vmatpush2.msra.mxu0 0.0
    %2009 = vmatprep.subr.mxu0 0.0
    %2010 = vmatpush2.msra.mxu0 0.0
    %2011 = vmatprep.subr.mxu0 0.0
    %2012 = vmatpush2.msra.mxu0 0.0
    %2013 = vmatprep.subr.mxu0 0.0
    %2014 = vmatpush2.msra.mxu0 0.0
    %2015 = vmatprep.subr.mxu0 0.0
    %2016 = vmatpush2.msra.mxu0 0.0
    %2017 = vmatprep.subr.mxu0 0.0
    %2018 = vmatpush2.msra.mxu0 0.0
    %2019 = vmatprep.subr.mxu0 0.0
    %2020 = vmatpush2.msra.mxu0 0.0
    %2021 = vmatprep.subr.mxu0 0.0
    %2022 = vmatpush2.msra.mxu0 0.0
    %2023 = vmatprep.subr.mxu0 0.0
    %2024 = vmatpush2.msra.mxu0 0.0
    %2025 = vmatprep.subr.mxu0 0.0
    %2026 = vmatpush2.msra.mxu0 0.0
    %2027 = vmatprep.subr.mxu0 0.0
    %2028 = vmatpush2.msra.mxu0 0.0
    %2029 = vmatprep.subr.mxu0 0.0
    %2030 = vmatpush2.msra.mxu0 0.0
    %2031 = vmatprep.mubr.f32.mxu0 0.0
    %2032 = vmatmul.mubr.f32.gmra.mxu0 %v943
    %v2033 = vpop.f32.mrf.mxu0
    %v2034 = vadd.f32 0.0, %v2033
    %v2035 = vpop.f32.mrf.mxu0
    %2036 = vdwg.mxu0
    %2038 = vrot.lane.b32.xlu0 %v2034, 96
    %v2039 = vpop.permute.xlu0 %2038
    %v2041 = vadd.f32 %v1019, %v2039
    %s2042 = scalar_lea.vmem %s14, 32
    %v2043 = vld [vmem:[%s2042] sm:$0xff]
    %v2044 = vld [vmem:[%s2042 + $0x8] sm:$0xff]
    %v2045 = vld [vmem:[%s2042 + $0x10] sm:$0xff]
    %v2046 = vld [vmem:[%s2042 + $0x18] sm:$0xff]
    %s2047 = scalar_lea.vmem [#allocation16], 32
    %v2048 = vld [vmem:[%s2047] sm:$0xff]
    %v2049 = vld [vmem:[%s2047 + $0x8] sm:$0xff]
    %v2050 = vld [vmem:[%s2047 + $0x10] sm:$0xff]
    %v2051 = vld [vmem:[%s2047 + $0x18] sm:$0xff]
    %v2052 = vsel %vm211, %v2034, 0
    %2054 = vmatprep.subr.mxu0 0.0
    %2055 = vmatpush1.msra.mxu0 0.0
    %2056 = vmatprep.subr.mxu0 0.0
    %2057 = vmatpush1.msra.mxu0 0.0
    %2058 = vmatprep.subr.mxu0 0.0
    %2059 = vmatpush1.msra.mxu0 0.0
    %2060 = vmatprep.subr.mxu0 0.0
    %2061 = vmatpush1.msra.mxu0 0.0
    %2062 = vmatprep.subr.mxu0 0.0
    %2063 = vmatpush1.msra.mxu0 0.0
    %2064 = vmatprep.subr.mxu0 0.0
    %2065 = vmatpush1.msra.mxu0 0.0
    %2066 = vmatprep.subr.mxu0 0.0
    %2067 = vmatpush1.msra.mxu0 0.0
    %2068 = vmatprep.subr.mxu0 0.0
    %2069 = vmatpush1.msra.mxu0 0.0
    %2070 = vmatprep.subr.mxu0 0.0
    %2071 = vmatpush1.msra.mxu0 0.0
    %2072 = vmatprep.subr.mxu0 0.0
    %2073 = vmatpush1.msra.mxu0 0.0
    %2074 = vmatprep.subr.mxu0 0.0
    %2075 = vmatpush1.msra.mxu0 0.0
    %2076 = vmatprep.subr.mxu0 0.0
    %2077 = vmatpush1.msra.mxu0 0.0
    %2078 = vmatprep.subr.mxu0 0.0
    %2079 = vmatpush1.msra.mxu0 %v2051
    %2080 = vmatprep.subr.mxu0 0.0
    %2081 = vmatpush1.msra.mxu0 %v2050
    %2082 = vmatprep.subr.mxu0 0.0
    %2083 = vmatpush1.msra.mxu0 %v2049
    %2084 = vmatprep.subr.mxu0 0.0
    %2085 = vmatpush1.msra.mxu0 %v2048
    %2086 = vmatprep.subr.mxu0 0.0
    %2087 = vmatpush2.msra.mxu0 0.0
    %2088 = vmatprep.subr.mxu0 0.0
    %2089 = vmatpush2.msra.mxu0 0.0
    %2090 = vmatprep.subr.mxu0 0.0
    %2091 = vmatpush2.msra.mxu0 0.0
    %2092 = vmatprep.subr.mxu0 0.0
    %2093 = vmatpush2.msra.mxu0 0.0
    %2094 = vmatprep.subr.mxu0 0.0
    %2095 = vmatpush2.msra.mxu0 0.0
    %2096 = vmatprep.subr.mxu0 0.0
    %2097 = vmatpush2.msra.mxu0 0.0
    %2098 = vmatprep.subr.mxu0 0.0
    %2099 = vmatpush2.msra.mxu0 0.0
    %2100 = vmatprep.subr.mxu0 0.0
    %2101 = vmatpush2.msra.mxu0 0.0
    %2102 = vmatprep.subr.mxu0 0.0
    %2103 = vmatpush2.msra.mxu0 0.0
    %2104 = vmatprep.subr.mxu0 0.0
    %2105 = vmatpush2.msra.mxu0 0.0
    %2106 = vmatprep.subr.mxu0 0.0
    %2107 = vmatpush2.msra.mxu0 0.0
    %2108 = vmatprep.subr.mxu0 0.0
    %2109 = vmatpush2.msra.mxu0 0.0
    %2110 = vmatprep.subr.mxu0 0.0
    %2111 = vmatpush2.msra.mxu0 0.0
    %2112 = vmatprep.subr.mxu0 0.0
    %2113 = vmatpush2.msra.mxu0 0.0
    %2114 = vmatprep.subr.mxu0 0.0
    %2115 = vmatpush2.msra.mxu0 0.0
    %2116 = vmatprep.subr.mxu0 0.0
    %2117 = vmatpush2.msra.mxu0 0.0
    %2118 = vmatprep.mubr.f32.mxu0 0.0
    %2119 = vmatmul.mubr.f32.gmra.mxu0 %v2052
    %v2120 = vpop.f32.mrf.mxu0
    %v2121 = vadd.f32 0.0, %v2120
    %v2122 = vpop.f32.mrf.mxu0
    %2123 = vdwg.mxu0
    %2124 = vmatprep.subr.mxu0 0.0
    %2125 = vmatpush1.msra.mxu0 0.0
    %2126 = vmatprep.subr.mxu0 0.0
    %2127 = vmatpush1.msra.mxu0 0.0
    %2128 = vmatprep.subr.mxu0 0.0
    %2129 = vmatpush1.msra.mxu0 0.0
    %2130 = vmatprep.subr.mxu0 0.0
    %2131 = vmatpush1.msra.mxu0 0.0
    %2132 = vmatprep.subr.mxu0 0.0
    %2133 = vmatpush1.msra.mxu0 0.0
    %2134 = vmatprep.subr.mxu0 0.0
    %2135 = vmatpush1.msra.mxu0 0.0
    %2136 = vmatprep.subr.mxu0 0.0
    %2137 = vmatpush1.msra.mxu0 0.0
    %2138 = vmatprep.subr.mxu0 0.0
    %2139 = vmatpush1.msra.mxu0 0.0
    %2140 = vmatprep.subr.mxu0 0.0
    %2141 = vmatpush1.msra.mxu0 0.0
    %2142 = vmatprep.subr.mxu0 0.0
    %2143 = vmatpush1.msra.mxu0 0.0
    %2144 = vmatprep.subr.mxu0 0.0
    %2145 = vmatpush1.msra.mxu0 0.0
    %2146 = vmatprep.subr.mxu0 0.0
    %2147 = vmatpush1.msra.mxu0 0.0
    %2148 = vmatprep.subr.mxu0 0.0
    %2149 = vmatpush1.msra.mxu0 %v2046
    %2150 = vmatprep.subr.mxu0 0.0
    %2151 = vmatpush1.msra.mxu0 %v2045
    %2152 = vmatprep.subr.mxu0 0.0
    %2153 = vmatpush1.msra.mxu0 %v2044
    %2154 = vmatprep.subr.mxu0 0.0
    %2155 = vmatpush1.msra.mxu0 %v2043
    %2156 = vmatprep.subr.mxu0 0.0
    %2157 = vmatpush2.msra.mxu0 0.0
    %2158 = vmatprep.subr.mxu0 0.0
    %2159 = vmatpush2.msra.mxu0 0.0
    %2160 = vmatprep.subr.mxu0 0.0
    %2161 = vmatpush2.msra.mxu0 0.0
    %2162 = vmatprep.subr.mxu0 0.0
    %2163 = vmatpush2.msra.mxu0 0.0
    %2164 = vmatprep.subr.mxu0 0.0
    %2165 = vmatpush2.msra.mxu0 0.0
    %2166 = vmatprep.subr.mxu0 0.0
    %2167 = vmatpush2.msra.mxu0 0.0
    %2168 = vmatprep.subr.mxu0 0.0
    %2169 = vmatpush2.msra.mxu0 0.0
    %2170 = vmatprep.subr.mxu0 0.0
    %2171 = vmatpush2.msra.mxu0 0.0
    %2172 = vmatprep.subr.mxu0 0.0
    %2173 = vmatpush2.msra.mxu0 0.0
    %2174 = vmatprep.subr.mxu0 0.0
    %2175 = vmatpush2.msra.mxu0 0.0
    %2176 = vmatprep.subr.mxu0 0.0
    %2177 = vmatpush2.msra.mxu0 0.0
    %2178 = vmatprep.subr.mxu0 0.0
    %2179 = vmatpush2.msra.mxu0 0.0
    %2180 = vmatprep.subr.mxu0 0.0
    %2181 = vmatpush2.msra.mxu0 0.0
    %2182 = vmatprep.subr.mxu0 0.0
    %2183 = vmatpush2.msra.mxu0 0.0
    %2184 = vmatprep.subr.mxu0 0.0
    %2185 = vmatpush2.msra.mxu0 0.0
    %2186 = vmatprep.subr.mxu0 0.0
    %2187 = vmatpush2.msra.mxu0 0.0
    %2188 = vmatprep.mubr.f32.mxu0 0.0
    %2189 = vmatmul.mubr.f32.gmra.mxu0 %v1276
    %v2190 = vpop.f32.mrf.mxu0
    %v2191 = vadd.f32 %v2121, %v2190
    %v2192 = vpop.f32.mrf.mxu0
    %2193 = vdwg.mxu0
    %s2194 = scalar_lea.vmem %s16, 1
    %v2195 = vld [vmem:[%s2194] sm:$0x1]
    %v2197 = vlaneseq
    %v2198 = vshrl.u32 %v2197, 7
    %v2199 = vsub.s32 0, %v2198
    %v2200 = vrot.slane %v2195, %v2199
    %v2202 = vadd.f32 %v2191, %v2200
    %v2203 = vsub.f32 0.0, %v2202
    %v2204 = vmul.f32 %v2203, 1.442695
    %v2205 = vpow.pop %v2204
    %v2206 = vadd.f32 %v2205, 1.0
    %v2207 = vrcp.pop %v2206
    %v2208 = vmul.f32 %v2202, %v2207
    %s2209 = scalar_lea.vmem [#allocation17], 32
    %v2210 = vld [vmem:[%s2209] sm:$0xff]
    %v2211 = vld [vmem:[%s2209 + $0x8] sm:$0xff]
    %v2212 = vld [vmem:[%s2209 + $0x10] sm:$0xff]
    %v2213 = vld [vmem:[%s2209 + $0x18] sm:$0xff]
    %v2215 = vsel %vm211, %v2208, 0
    %2217 = vmatprep.subr.mxu0 0.0
    %2218 = vmatpush1.msra.mxu0 0.0
    %2219 = vmatprep.subr.mxu0 0.0
    %2220 = vmatpush1.msra.mxu0 0.0
    %2221 = vmatprep.subr.mxu0 0.0
    %2222 = vmatpush1.msra.mxu0 0.0
    %2223 = vmatprep.subr.mxu0 0.0
    %2224 = vmatpush1.msra.mxu0 0.0
    %2225 = vmatprep.subr.mxu0 0.0
    %2226 = vmatpush1.msra.mxu0 0.0
    %2227 = vmatprep.subr.mxu0 0.0
    %2228 = vmatpush1.msra.mxu0 0.0
    %2229 = vmatprep.subr.mxu0 0.0
    %2230 = vmatpush1.msra.mxu0 0.0
    %2231 = vmatprep.subr.mxu0 0.0
    %2232 = vmatpush1.msra.mxu0 0.0
    %2233 = vmatprep.subr.mxu0 0.0
    %2234 = vmatpush1.msra.mxu0 0.0
    %2235 = vmatprep.subr.mxu0 0.0
    %2236 = vmatpush1.msra.mxu0 0.0
    %2237 = vmatprep.subr.mxu0 0.0
    %2238 = vmatpush1.msra.mxu0 0.0
    %2239 = vmatprep.subr.mxu0 0.0
    %2240 = vmatpush1.msra.mxu0 0.0
    %2241 = vmatprep.subr.mxu0 0.0
    %2242 = vmatpush1.msra.mxu0 %v2213
    %2243 = vmatprep.subr.mxu0 0.0
    %2244 = vmatpush1.msra.mxu0 %v2212
    %2245 = vmatprep.subr.mxu0 0.0
    %2246 = vmatpush1.msra.mxu0 %v2211
    %2247 = vmatprep.subr.mxu0 0.0
    %2248 = vmatpush1.msra.mxu0 %v2210
    %2249 = vmatprep.subr.mxu0 0.0
    %2250 = vmatpush2.msra.mxu0 0.0
    %2251 = vmatprep.subr.mxu0 0.0
    %2252 = vmatpush2.msra.mxu0 0.0
    %2253 = vmatprep.subr.mxu0 0.0
    %2254 = vmatpush2.msra.mxu0 0.0
    %2255 = vmatprep.subr.mxu0 0.0
    %2256 = vmatpush2.msra.mxu0 0.0
    %2257 = vmatprep.subr.mxu0 0.0
    %2258 = vmatpush2.msra.mxu0 0.0
    %2259 = vmatprep.subr.mxu0 0.0
    %2260 = vmatpush2.msra.mxu0 0.0
    %2261 = vmatprep.subr.mxu0 0.0
    %2262 = vmatpush2.msra.mxu0 0.0
    %2263 = vmatprep.subr.mxu0 0.0
    %2264 = vmatpush2.msra.mxu0 0.0
    %2265 = vmatprep.subr.mxu0 0.0
    %2266 = vmatpush2.msra.mxu0 0.0
    %2267 = vmatprep.subr.mxu0 0.0
    %2268 = vmatpush2.msra.mxu0 0.0
    %2269 = vmatprep.subr.mxu0 0.0
    %2270 = vmatpush2.msra.mxu0 0.0
    %2271 = vmatprep.subr.mxu0 0.0
    %2272 = vmatpush2.msra.mxu0 0.0
    %2273 = vmatprep.subr.mxu0 0.0
    %2274 = vmatpush2.msra.mxu0 0.0
    %2275 = vmatprep.subr.mxu0 0.0
    %2276 = vmatpush2.msra.mxu0 0.0
    %2277 = vmatprep.subr.mxu0 0.0
    %2278 = vmatpush2.msra.mxu0 0.0
    %2279 = vmatprep.subr.mxu0 0.0
    %2280 = vmatpush2.msra.mxu0 0.0
    %2281 = vmatprep.mubr.f32.mxu0 0.0
    %2282 = vmatmul.mubr.f32.gmra.mxu0 %v2215
    %v2283 = vpop.f32.mrf.mxu0
    %v2284 = vadd.f32 0.0, %v2283
    %v2285 = vpop.f32.mrf.mxu0
    %2286 = vdwg.mxu0
    %v2287 = vadd.f32 %v1269, %v2284
    %s2288 = scalar_lea.vmem %s18, 1
    %v2289 = vld [vmem:[%s2288] sm:$0x1]
    %v2291 = vlaneseq
    %v2292 = vshrl.u32 %v2291, 7
    %v2293 = vsub.s32 0, %v2292
    %v2294 = vrot.slane %v2289, %v2293
    %v2296 = vadd.f32 %v2287, %v2294
    %2298 = vrot.lane.b32.xlu0 %v2041, 32
    %v2299 = vpop.permute.xlu0 %2298
    %v2301 = vsel %vm211, %v2296, %v2299
    %vm2302 = vcmask 285696
    %2303 = vst.msk [vmem:[#allocation19] sm:$0xff] %vm2302, %v2301
    // Predicated region
    $region118: #{tpu_custom_call.1} parent=1 // pred_check
      _
    $region119: #{tpu_custom_call.1} parent=1 // pred_check_branch
      %2305 = sbr.rel (0) target = $region121
    $region120: #{tpu_custom_call.1} parent=1 // pred_region
      %s2307 = ssub.s32 128, 128
      %2308 = vsyncadd [#allocation4], %s2307
      %s2310 = sshll.u32 [#allocation19], 4
      %s2311 = int_to_ptr.vmem [resolvable:$true] %s2310
      %2313 = dma.vmem_to_hbm [thread:$0]  %s2311, 128, %s19, [#allocation4]
    $region121: #{tpu_custom_call.1} parent=1 // pred_fallthru
      _
    // Predicated region
    $region122: #{tpu_custom_call.1} parent=1 // pred_check
      _
    $region123: #{tpu_custom_call.1} parent=1 // pred_check_branch
      %2315 = sbr.rel (0) target = $region125
    $region124: #{tpu_custom_call.1} parent=1 // pred_region
      %2316 = dma.done [#allocation4], 128
    $region125: #{tpu_custom_call.1} parent=1 // pred_fallthru
      _
    %2317 = vsyncpa [#allocation3], 1
    %2318 = vsyncpa [#allocation6], 1
    %2319 = vsyncpa [#allocation9], 1
    %2320 = vsyncpa [#allocation12], 1
    %2321 = vsyncpa [#allocation15], 1
    %2322 = vsyncpa [#allocation18], 1
    %2323 = vsyncpa [#allocation4], 1

</llo_original>
